<compile_context>
chip_gen: v7x
topology: tpu7x:2x2x1
jax: 0.10.0
libtpu: 0.0.40
codegen_flags: <defaults>
</compile_context>

<pallas_src>
import functools

import numpy as np

import jax
import jax.numpy as jnp
from jax.experimental import pallas as pl
from jax.experimental.pallas import tpu as pltpu


def _round_up(x, m):
    return ((x + m - 1) // m) * m


# ----------------------------------------------------------------------------
# Single fused Pallas kernel: conv1 -> relu -> primary conv -> squash -> digit
# ----------------------------------------------------------------------------
def capsule_kernel(x_ref, t1_ref, b1_ref, t2_ref, b2_ref, wd_ref, e_ref, o_ref,
                   *, vec_len):
    """One batch-row tile of the whole Capsule.forward.

    x_ref : (TB, C*H*W)      bf16  flattened input images (NCHW flatten)
    t1_ref: (C*H*W, O1*S1)   bf16  Toeplitz matrix of conv1 (k=9, s=1)
    b1_ref: (1, O1*S1)       f32   conv1 bias expanded over spatial positions
    t2_ref: (O1*S1, N)       bf16  Toeplitz matrix of conv2 (k=9, s=2); N = P*S2
    b2_ref: (1, N)           f32   conv2 bias expanded over spatial positions
    wd_ref: (N, D*K)         f32   Wdigit pre-summed over v (identical copies)
    e_ref : (D*K, D*K)       f32   block-diag kron(eye(D), ones(K,K))
    o_ref : (TB, D*K)        f32   squashed digit capsules
    """
    # ---- Stage 1: ConvLayer (k=9, s=1) + bias + ReLU, kept resident in VMEM ----
    h1 = jnp.dot(x_ref[...], t1_ref[...], preferred_element_type=jnp.float32)
    h1 = jnp.maximum(h1 + b1_ref[...], 0.0)                      # (TB, O1*S1)

    # ---- Stage 2: PrimaryLayer conv (k=9, s=2) + squash over V identical copies
    # ||s||^2 = V * c^2  =>  squash(c) = c * sqrt(sq) / (1 + sq),  sq = V*c^2.
    h2 = jnp.dot(h1.astype(t2_ref.dtype), t2_ref[...],
                 preferred_element_type=jnp.float32)
    h2 = h2 + b2_ref[...]                                        # (TB, N)
    sq = vec_len * h2 * h2
    prim = h2 * jnp.sqrt(sq) * pl.reciprocal(1.0 + sq, approx=True)

    # ---- Stage 3: DigitLayer. Routing softmax is over a size-1 dim (== 1.0),
    # so the 3-iteration routing collapses exactly to v = squash(sum_n u_hat).
    # Wdigit is pre-summed over v on the host (the V copies are identical).
    s = jnp.dot(prim, wd_ref[...], preferred_element_type=jnp.float32)   # (TB, D*K)
    # per-digit squared norm replicated across the K components (block-diag E)
    sqd = jnp.dot(s * s, e_ref[...], preferred_element_type=jnp.float32)  # (TB, D*K)
    o_ref[...] = s * jnp.sqrt(sqd) * pl.reciprocal(1.0 + sqd, approx=True)


# ----------------------------------------------------------------------------
# Host-side weight preprocessing (per-weight work, done once; no per-sample data)
# ----------------------------------------------------------------------------
def _conv_toeplitz(w, b, H, W, stride):
    """Dense Toeplitz matrix T and expanded bias b_full such that
       NCHW_flatten(conv2d(x, w, b, stride)) == NCHW_flatten(x) @ T + b_full."""
    w = np.asarray(w, dtype=np.float32)
    b = np.asarray(b, dtype=np.float32)
    O, C, k, _ = w.shape
    OH = (H - k) // stride + 1
    OW = (W - k) // stride + 1
    T = np.zeros((C, H, W, O, OH, OW), dtype=np.float32)
    w_cko = np.transpose(w, (1, 2, 3, 0))                        # (C, k, k, O)
    for i in range(OH):
        for j in range(OW):
            T[:, i * stride:i * stride + k, j * stride:j * stride + k, :, i, j] = w_cko
    T = T.reshape(C * H * W, O * OH * OW)
    b_full = np.repeat(b, OH * OW)                               # column order o*OH*OW + i*OW + j
    return jnp.asarray(T), jnp.asarray(b_full), OH, OW


# ----------------------------------------------------------------------------
# Wrapper: builds GEMM operands, tiles the batch, launches the fused kernel
# ----------------------------------------------------------------------------
def capsule_forward(x, params, cfg):
    """Capsule.forward == digit(primary(conv(x))).  Returns (B, D, K, 1)."""
    V = cfg["primary_vec_length"]
    D = cfg["digit_channels"]
    K = cfg["digit_vec_length"]
    N = cfg["primary_capsule_num"]
    B, C, H, W = x.shape

    # Conv weights -> Toeplitz GEMM operands (NCHW flatten on both sides, so the
    # primary capsule index n = p*OH2*OW2 + h*OW2 + w matches the torch .view()).
    t1, b1_full, OH1, OW1 = _conv_toeplitz(params["w1"], params["b1"], H, W, stride=1)
    t2, b2_full, OH2, OW2 = _conv_toeplitz(params["w2"], params["b2"], OH1, OW1, stride=2)
    P = params["w2"].shape[0]
    assert N == P * OH2 * OW2, (N, P, OH2, OW2)

    # Digit weights pre-summed over v (the V capsule copies are identical).
    wd = jnp.asarray(params["Wdigit"], jnp.float32).sum(axis=-1).reshape(N, D * K)
    # Block-diagonal expansion matrix for the per-digit squared norm.
    e_blk = jnp.asarray(np.kron(np.eye(D, dtype=np.float32),
                                np.ones((K, K), dtype=np.float32)))

    Fin = C * H * W
    P1 = t1.shape[1]          # O1 * OH1 * OW1
    DK = D * K

    # Batch-row tiling: TB=128 keeps the (TB, P1) f32 intermediate < 1 MiB;
    # total VMEM (double-buffered bf16 T1 ~1.8 MiB + small operands) << 16 MiB,
    # so it fits the default scoped limit on every chip incl. v7x (64 MiB phys).
    TB = min(128, _round_up(B, 8))
    B_pad = _round_up(B, TB)
    x_flat = x.reshape(B, Fin)
    if B_pad != B:
        x_flat = jnp.pad(x_flat, ((0, B_pad - B), (0, 0)))

    kern = functools.partial(capsule_kernel, vec_len=float(V))
    out = pl.pallas_call(
        kern,
        out_shape=jax.ShapeDtypeStruct((B_pad, DK), jnp.float32),
        grid=(B_pad // TB,),
        in_specs=[
            pl.BlockSpec((TB, Fin), lambda i: (i, 0)),   # input rows (tiled)
            pl.BlockSpec((Fin, P1), lambda i: (0, 0)),   # conv1 Toeplitz (resident)
            pl.BlockSpec((1, P1), lambda i: (0, 0)),     # conv1 bias
            pl.BlockSpec((P1, N), lambda i: (0, 0)),     # conv2 Toeplitz (resident)
            pl.BlockSpec((1, N), lambda i: (0, 0)),      # conv2 bias
            pl.BlockSpec((N, DK), lambda i: (0, 0)),     # Wdigit (v-summed)
            pl.BlockSpec((DK, DK), lambda i: (0, 0)),    # block-diag norm expander
        ],
        out_specs=pl.BlockSpec((TB, DK), lambda i: (i, 0)),
        compiler_params=pltpu.CompilerParams(
            dimension_semantics=("parallel",),           # shard row tiles across TCs
            vmem_limit_bytes=32 * 1024 * 1024,
        ),
    )(
        x_flat.astype(jnp.bfloat16),     # bf16 MXU operands, f32 accumulation
        t1.astype(jnp.bfloat16),
        b1_full.reshape(1, P1),
        t2.astype(jnp.bfloat16),
        b2_full.reshape(1, N),
        wd,
        e_blk,
    )
    return out[:B].reshape(B, D, K, 1)


# ----------------------------------------------------------------------------
# Pure-JAX f32 reference (for a sanity check against the Pallas path)
# ----------------------------------------------------------------------------
def capsule_forward_ref(x, params, cfg):
    V = cfg["primary_vec_length"]
    D = cfg["digit_channels"]
    K = cfg["digit_vec_length"]
    N = cfg["primary_capsule_num"]
    B = x.shape[0]
    dn = ("NCHW", "OIHW", "NCHW")

    c1 = jax.lax.conv_general_dilated(x, params["w1"], (1, 1), "VALID",
                                      dimension_numbers=dn)
    c1 = jnp.maximum(c1 + params["b1"][None, :, None, None], 0.0)
    c2 = jax.lax.conv_general_dilated(c1, params["w2"], (2, 2), "VALID",
                                      dimension_numbers=dn)
    c2 = c2 + params["b2"][None, :, None, None]
    sq = V * c2 * c2
    prim = c2 * jnp.sqrt(sq) / (1.0 + sq)          # squash over V identical copies
    x_caps = prim.reshape(B, N)
    # u_hat[b,n,d,k] = sum_v W[n,d,k,v] * x_caps[b,n]; routing softmax over a
    # size-1 dim == 1, so the 3-iteration routing collapses to a plain sum.
    u_hat = jnp.einsum("ndkv,bn->bndk", params["Wdigit"], x_caps)
    s = u_hat.sum(axis=1)                          # (B, D, K)
    sqn = (s * s).sum(axis=-1, keepdims=True)
    v = s * jnp.sqrt(sqn) / (1.0 + sqn)
    return v.reshape(B, D, K, 1)


# ----------------------------------------------------------------------------
if __name__ == "__main__":
    # Small shapes consistent with the module: 20x20x1 input, two k=9 convs.
    cfg = dict(
        input_height=20, input_width=20, input_channels=1,
        conv_channels=8, primary_channels=8, digit_channels=10,
        primary_capsule_num=8 * 2 * 2,      # P * OH2 * OW2 = 8 * 2 * 2
        primary_vec_length=8, digit_vec_length=16,
    )
    B = 2

    key = jax.random.PRNGKey(0)
    k_x, k_w1, k_b1, k_w2, k_b2, k_wd = jax.random.split(key, 6)

    x = jax.random.normal(k_x, (B, cfg["input_channels"],
                                cfg["input_height"], cfg["input_width"]),
                          dtype=jnp.float32)

    params = {
        "w1": 0.1 * jax.random.normal(
            k_w1, (cfg["conv_channels"], cfg["input_channels"], 9, 9), jnp.float32),
        "b1": 0.1 * jax.random.normal(k_b1, (cfg["conv_channels"],), jnp.float32),
        "w2": 0.05 * jax.random.normal(
            k_w2, (cfg["primary_channels"], cfg["conv_channels"], 9, 9), jnp.float32),
        "b2": 0.05 * jax.random.normal(k_b2, (cfg["primary_channels"],), jnp.float32),
        # DigitLayer: torch.randn(N, D, K, V) / 100
        "Wdigit": jax.random.normal(
            k_wd, (cfg["primary_capsule_num"], cfg["digit_channels"],
                   cfg["digit_vec_length"], cfg["primary_vec_length"]),
            jnp.float32) / 100.0,
    }

    out = jax.block_until_ready(capsule_forward(x, params, cfg))
    ref = jax.block_until_ready(capsule_forward_ref(x, params, cfg))

    assert out.shape == (B, cfg["digit_channels"], cfg["digit_vec_length"], 1), out.shape
    assert bool(jnp.all(jnp.isfinite(out)))
    max_err = float(jnp.max(jnp.abs(out - ref)))
    assert bool(jnp.allclose(out, ref, rtol=1e-2, atol=1e-2)), \
        f"mismatch vs JAX reference, max abs err = {max_err}"

    print("KERNEL_OK")
</pallas_src>

<mosaic_0001>
module attributes {stable_mosaic.version = 11 : i64} {
  func.func @capsule_kernel(%arg0: i32, %arg1: memref<8x400xbf16, #tpu.memory_space<vmem>>, %arg2: memref<400x1152xbf16, #tpu.memory_space<vmem>>, %arg3: memref<1x1152xf32, #tpu.memory_space<vmem>>, %arg4: memref<1152x32xbf16, #tpu.memory_space<vmem>>, %arg5: memref<1x32xf32, #tpu.memory_space<vmem>>, %arg6: memref<32x160xf32, #tpu.memory_space<vmem>>, %arg7: memref<160x160xf32, #tpu.memory_space<vmem>>, %arg8: memref<8x160xf32, #tpu.memory_space<vmem>>) attributes {dimension_semantics = [#tpu.dimension_semantics<parallel>], iteration_bounds = array<i64: 1>, scalar_prefetch = 0 : i64, scratch_operands = 0 : i64, tpu.core_type = #tpu.core_type<tc>, window_params = [{transform_indices = @transform_0, window_bounds = array<i64: 8, 400>}, {pipeline_mode = #tpu.pipeline_mode<synchronous>, transform_indices = @transform_1, window_bounds = array<i64: 400, 1152>}, {pipeline_mode = #tpu.pipeline_mode<synchronous>, transform_indices = @transform_2, window_bounds = array<i64: 1, 1152>}, {pipeline_mode = #tpu.pipeline_mode<synchronous>, transform_indices = @transform_3, window_bounds = array<i64: 1152, 32>}, {pipeline_mode = #tpu.pipeline_mode<synchronous>, transform_indices = @transform_4, window_bounds = array<i64: 1, 32>}, {pipeline_mode = #tpu.pipeline_mode<synchronous>, transform_indices = @transform_5, window_bounds = array<i64: 32, 160>}, {pipeline_mode = #tpu.pipeline_mode<synchronous>, transform_indices = @transform_6, window_bounds = array<i64: 160, 160>}, {transform_indices = @transform_7, window_bounds = array<i64: 8, 160>}]} {
    %c0 = arith.constant 0 : index
    %c0_0 = arith.constant 0 : index
    %0 = vector.load %arg1[%c0, %c0_0] : memref<8x400xbf16, #tpu.memory_space<vmem>>, vector<8x400xbf16>
    %c0_1 = arith.constant 0 : index
    %c0_2 = arith.constant 0 : index
    %1 = vector.load %arg2[%c0_1, %c0_2] : memref<400x1152xbf16, #tpu.memory_space<vmem>>, vector<400x1152xbf16>
    %cst = arith.constant dense<0.000000e+00> : vector<8x1152xf32>
    %2 = tpu.matmul %0, %1, %cst {dimension_numbers = #tpu.dot_dimension_numbers<[1], [0], [0], [1], [0, 0, 1, 1], [], []>} : vector<8x400xbf16>, vector<400x1152xbf16>, vector<8x1152xf32> -> vector<8x1152xf32>
    %c0_3 = arith.constant 0 : index
    %c0_4 = arith.constant 0 : index
    %3 = vector.load %arg3[%c0_3, %c0_4] : memref<1x1152xf32, #tpu.memory_space<vmem>>, vector<1x1152xf32>
    %4 = vector.broadcast %3 : vector<1x1152xf32> to vector<8x1152xf32>
    %5 = arith.addf %2, %4 : vector<8x1152xf32>
    %cst_5 = arith.constant 0.000000e+00 : f32
    %6 = vector.broadcast %cst_5 : f32 to vector<8x1152xf32>
    %7 = arith.maximumf %5, %6 : vector<8x1152xf32>
    %8 = arith.truncf %7 : vector<8x1152xf32> to vector<8x1152xbf16>
    %c0_6 = arith.constant 0 : index
    %c0_7 = arith.constant 0 : index
    %9 = vector.load %arg4[%c0_6, %c0_7] : memref<1152x32xbf16, #tpu.memory_space<vmem>>, vector<1152x32xbf16>
    %cst_8 = arith.constant dense<0.000000e+00> : vector<8x32xf32>
    %10 = tpu.matmul %8, %9, %cst_8 {dimension_numbers = #tpu.dot_dimension_numbers<[1], [0], [0], [1], [0, 0, 1, 1], [], []>} : vector<8x1152xbf16>, vector<1152x32xbf16>, vector<8x32xf32> -> vector<8x32xf32>
    %c0_9 = arith.constant 0 : index
    %c0_10 = arith.constant 0 : index
    %11 = vector.load %arg5[%c0_9, %c0_10] : memref<1x32xf32, #tpu.memory_space<vmem>>, vector<1x32xf32>
    %12 = vector.broadcast %11 : vector<1x32xf32> to vector<8x32xf32>
    %13 = arith.addf %10, %12 : vector<8x32xf32>
    %cst_11 = arith.constant 8.000000e+00 : f32
    %14 = vector.broadcast %cst_11 : f32 to vector<8x32xf32>
    %15 = arith.mulf %14, %13 : vector<8x32xf32>
    %16 = arith.mulf %15, %13 : vector<8x32xf32>
    %17 = math.sqrt %16 : vector<8x32xf32>
    %18 = arith.mulf %13, %17 : vector<8x32xf32>
    %cst_12 = arith.constant 1.000000e+00 : f32
    %19 = vector.broadcast %cst_12 : f32 to vector<8x32xf32>
    %20 = arith.addf %19, %16 : vector<8x32xf32>
    %21 = tpu.reciprocal %20 {approx = true} : vector<8x32xf32> -> vector<8x32xf32>
    %22 = arith.mulf %18, %21 : vector<8x32xf32>
    %c0_13 = arith.constant 0 : index
    %c0_14 = arith.constant 0 : index
    %23 = vector.load %arg6[%c0_13, %c0_14] : memref<32x160xf32, #tpu.memory_space<vmem>>, vector<32x160xf32>
    %cst_15 = arith.constant dense<0.000000e+00> : vector<8x160xf32>
    %24 = tpu.matmul %22, %23, %cst_15 {dimension_numbers = #tpu.dot_dimension_numbers<[1], [0], [0], [1], [0, 0, 1, 1], [], []>} : vector<8x32xf32>, vector<32x160xf32>, vector<8x160xf32> -> vector<8x160xf32>
    %25 = arith.mulf %24, %24 : vector<8x160xf32>
    %c0_16 = arith.constant 0 : index
    %c0_17 = arith.constant 0 : index
    %26 = vector.load %arg7[%c0_16, %c0_17] : memref<160x160xf32, #tpu.memory_space<vmem>>, vector<160x160xf32>
    %cst_18 = arith.constant dense<0.000000e+00> : vector<8x160xf32>
    %27 = tpu.matmul %25, %26, %cst_18 {dimension_numbers = #tpu.dot_dimension_numbers<[1], [0], [0], [1], [0, 0, 1, 1], [], []>} : vector<8x160xf32>, vector<160x160xf32>, vector<8x160xf32> -> vector<8x160xf32>
    %28 = math.sqrt %27 : vector<8x160xf32>
    %29 = arith.mulf %24, %28 : vector<8x160xf32>
    %cst_19 = arith.constant 1.000000e+00 : f32
    %30 = vector.broadcast %cst_19 : f32 to vector<8x160xf32>
    %31 = arith.addf %30, %27 : vector<8x160xf32>
    %32 = tpu.reciprocal %31 {approx = true} : vector<8x160xf32> -> vector<8x160xf32>
    %33 = arith.mulf %29, %32 : vector<8x160xf32>
    %c0_20 = arith.constant 0 : index
    %c0_21 = arith.constant 0 : index
    %34 = vector.load %arg8[%c0_20, %c0_21] : memref<8x160xf32, #tpu.memory_space<vmem>>, vector<8x160xf32>
    tpu.vector_store %arg8[%c0_20, %c0_21], %33 {strides = array<i32>} : memref<8x160xf32, #tpu.memory_space<vmem>>, vector<8x160xf32>,
    return
  }
  func.func @transform_0(%arg0: i32) -> (i32, i32) {
    %c0_i32 = arith.constant 0 : i32
    %c0_i32_0 = arith.constant 0 : i32
    return %arg0, %c0_i32 : i32, i32
  }
  func.func @transform_1(%arg0: i32) -> (i32, i32) {
    %c0_i32 = arith.constant 0 : i32
    %c0_i32_0 = arith.constant 0 : i32
    %c0_i32_1 = arith.constant 0 : i32
    return %c0_i32, %c0_i32_0 : i32, i32
  }
  func.func @transform_2(%arg0: i32) -> (i32, i32) {
    %c0_i32 = arith.constant 0 : i32
    %c0_i32_0 = arith.constant 0 : i32
    %c0_i32_1 = arith.constant 0 : i32
    return %c0_i32, %c0_i32_0 : i32, i32
  }
  func.func @transform_3(%arg0: i32) -> (i32, i32) {
    %c0_i32 = arith.constant 0 : i32
    %c0_i32_0 = arith.constant 0 : i32
    %c0_i32_1 = arith.constant 0 : i32
    return %c0_i32, %c0_i32_0 : i32, i32
  }
  func.func @transform_4(%arg0: i32) -> (i32, i32) {
    %c0_i32 = arith.constant 0 : i32
    %c0_i32_0 = arith.constant 0 : i32
    %c0_i32_1 = arith.constant 0 : i32
    return %c0_i32, %c0_i32_0 : i32, i32
  }
  func.func @transform_5(%arg0: i32) -> (i32, i32) {
    %c0_i32 = arith.constant 0 : i32
    %c0_i32_0 = arith.constant 0 : i32
    %c0_i32_1 = arith.constant 0 : i32
    return %c0_i32, %c0_i32_0 : i32, i32
  }
  func.func @transform_6(%arg0: i32) -> (i32, i32) {
    %c0_i32 = arith.constant 0 : i32
    %c0_i32_0 = arith.constant 0 : i32
    %c0_i32_1 = arith.constant 0 : i32
    return %c0_i32, %c0_i32_0 : i32, i32
  }
  func.func @transform_7(%arg0: i32) -> (i32, i32) {
    %c0_i32 = arith.constant 0 : i32
    %c0_i32_0 = arith.constant 0 : i32
    return %arg0, %c0_i32 : i32, i32
  }
}

</mosaic_0001>

<llo_original>
// kernel: tpu_custom_call.1
$region0: #{tpu_custom_call.1}
  #allocation0 [shape = 'u32[]', space=smem, size = 0x4, offset = 0x4, fixed_abs, tag = 'smem constant byte address 0x4 - core index']
  #allocation1 [shape = 'u32[144,128]{1,0:T(1,128)}', space=vmem, size = 0x12000, scoped, tag = 'internal scratch']
  %s0 = inlined_call_operand.vmem [shape: bf16[8,400], index: 0, kind: input, shape index: {}]
  %s1 = inlined_call_operand.hbm [shape: bf16[400,1152], index: 1, kind: input, shape index: {}]
  %s2 = inlined_call_operand.vmem [shape: f32[1,1152], index: 2, kind: input, shape index: {}]
  %s3 = inlined_call_operand.vmem [shape: bf16[1152,32], index: 3, kind: input, shape index: {}]
  %s4 = inlined_call_operand.vmem [shape: f32[1,32], index: 4, kind: input, shape index: {}]
  %s5 = inlined_call_operand.vmem [shape: f32[32,160], index: 5, kind: input, shape index: {}]
  %s6 = inlined_call_operand.vmem [shape: f32[160,160], index: 6, kind: input, shape index: {}]
  %s7 = inlined_call_operand.hbm [shape: f32[8,160], index: 7, kind: output, shape index: {}]
  %s8 = sld [smem:[#allocation0]]
  $region42: #{tpu_custom_call.1} parent=0
    _
  %s10 = ssub.s32 1, %s8
  %s11 = scalar_select 0, %s10, %s8
  $region1: #{tpu_custom_call.1} parent=0
    #allocation2 [shape = 'u8[921600]{0}', space=vmem, size = 0xe1000, scoped, tag = 'input window, operand 1, single buffered']
    #allocation3 [shape = 's32[1]{0}', space=sflag, size = 0x4, scoped, tag = 'scoped memory for tpu_custom_call.1']
    #allocation4 [shape = 's32[1]{0}', space=sflag, size = 0x4, scoped, tag = 'scoped memory for tpu_custom_call.1']
    #allocation5 [shape = 'u8[8192]{0}', space=vmem, size = 0x2000, scoped, tag = 'output window, operand 0, single buffered']
    %12 = vsyncpa [#allocation3], 0
    %13 = vsyncpa [#allocation4], 0
    // Predicated region
    $region2: #{tpu_custom_call.1} parent=1 // pred_check
      _
    $region3: #{tpu_custom_call.1} parent=1 // pred_check_branch
      %15 = sbr.rel (0) target = $region5
    $region4: #{tpu_custom_call.1} parent=1 // pred_region
      _
    $region5: #{tpu_custom_call.1} parent=1 // pred_fallthru
      _
    // Predicated region
    $region6: #{tpu_custom_call.1} parent=1 // pred_check
      _
    $region7: #{tpu_custom_call.1} parent=1 // pred_check_branch
      %17 = sbr.rel (0) target = $region9
    $region8: #{tpu_custom_call.1} parent=1 // pred_region
      %s19 = ssub.s32 28800, 28800
      %20 = vsyncadd [#allocation3], %s19
      %s21 = sshll.u32 [#allocation2], 4
      %s22 = int_to_ptr.vmem [resolvable:$true] %s21
      %27 = dma.hbm_to_vmem [thread:$0]  %s1, 28800, %s22, [#allocation3], 576, 576, 36
    $region9: #{tpu_custom_call.1} parent=1 // pred_fallthru
      _
    // Predicated region
    $region10: #{tpu_custom_call.1} parent=1 // pred_check
      _
    $region11: #{tpu_custom_call.1} parent=1 // pred_check_branch
      %29 = sbr.rel (0) target = $region13
    $region12: #{tpu_custom_call.1} parent=1 // pred_region
      _
    $region13: #{tpu_custom_call.1} parent=1 // pred_fallthru
      _
    // Predicated region
    $region14: #{tpu_custom_call.1} parent=1 // pred_check
      _
    $region15: #{tpu_custom_call.1} parent=1 // pred_check_branch
      %31 = sbr.rel (0) target = $region17
    $region16: #{tpu_custom_call.1} parent=1 // pred_region
      _
    $region17: #{tpu_custom_call.1} parent=1 // pred_fallthru
      _
    // Predicated region
    $region18: #{tpu_custom_call.1} parent=1 // pred_check
      _
    $region19: #{tpu_custom_call.1} parent=1 // pred_check_branch
      %33 = sbr.rel (0) target = $region21
    $region20: #{tpu_custom_call.1} parent=1 // pred_region
      _
    $region21: #{tpu_custom_call.1} parent=1 // pred_fallthru
      _
    // Predicated region
    $region22: #{tpu_custom_call.1} parent=1 // pred_check
      _
    $region23: #{tpu_custom_call.1} parent=1 // pred_check_branch
      %35 = sbr.rel (0) target = $region25
    $region24: #{tpu_custom_call.1} parent=1 // pred_region
      _
    $region25: #{tpu_custom_call.1} parent=1 // pred_fallthru
      _
    // Predicated region
    $region26: #{tpu_custom_call.1} parent=1 // pred_check
      _
    $region27: #{tpu_custom_call.1} parent=1 // pred_check_branch
      %37 = sbr.rel (0) target = $region29
    $region28: #{tpu_custom_call.1} parent=1 // pred_region
      _
    $region29: #{tpu_custom_call.1} parent=1 // pred_fallthru
      _
    // Predicated region
    $region30: #{tpu_custom_call.1} parent=1 // pred_check
      _
    $region31: #{tpu_custom_call.1} parent=1 // pred_check_branch
      %39 = sbr.rel (0) target = $region33
    $region32: #{tpu_custom_call.1} parent=1 // pred_region
      %40 = dma.done [#allocation3], 28800
    $region33: #{tpu_custom_call.1} parent=1 // pred_fallthru
      _
    %v42 = vld [vmem:[%s0] sm:$0xff]
    %v43 = vld [vmem:[%s0 + $0x8] sm:$0xff]
    %v44 = vld [vmem:[#allocation2] sm:$0xff]
    %v45 = vld [vmem:[#allocation2 + $0x8] sm:$0xff]
    %v46 = vld [vmem:[#allocation2 + $0x10] sm:$0xff]
    %v47 = vld [vmem:[#allocation2 + $0x18] sm:$0xff]
    %v48 = vld [vmem:[#allocation2 + $0x20] sm:$0xf]
    %v49 = vld [vmem:[#allocation2 + $0x24] sm:$0xff]
    %v50 = vld [vmem:[#allocation2 + $0x2c] sm:$0xff]
    %v51 = vld [vmem:[#allocation2 + $0x34] sm:$0xff]
    %v52 = vld [vmem:[#allocation2 + $0x3c] sm:$0xff]
    %v53 = vld [vmem:[#allocation2 + $0x44] sm:$0xf]
    %v54 = vld [vmem:[#allocation2 + $0x48] sm:$0xff]
    %v55 = vld [vmem:[#allocation2 + $0x50] sm:$0xff]
    %v56 = vld [vmem:[#allocation2 + $0x58] sm:$0xff]
    %v57 = vld [vmem:[#allocation2 + $0x60] sm:$0xff]
    %v58 = vld [vmem:[#allocation2 + $0x68] sm:$0xf]
    %v59 = vld [vmem:[#allocation2 + $0x6c] sm:$0xff]
    %v60 = vld [vmem:[#allocation2 + $0x74] sm:$0xff]
    %v61 = vld [vmem:[#allocation2 + $0x7c] sm:$0xff]
    %v62 = vld [vmem:[#allocation2 + $0x84] sm:$0xff]
    %v63 = vld [vmem:[#allocation2 + $0x8c] sm:$0xf]
    %v64 = vld [vmem:[#allocation2 + $0x90] sm:$0xff]
    %v65 = vld [vmem:[#allocation2 + $0x98] sm:$0xff]
    %v66 = vld [vmem:[#allocation2 + $0xa0] sm:$0xff]
    %v67 = vld [vmem:[#allocation2 + $0xa8] sm:$0xff]
    %v68 = vld [vmem:[#allocation2 + $0xb0] sm:$0xf]
    %v69 = vld [vmem:[#allocation2 + $0xb4] sm:$0xff]
    %v70 = vld [vmem:[#allocation2 + $0xbc] sm:$0xff]
    %v71 = vld [vmem:[#allocation2 + $0xc4] sm:$0xff]
    %v72 = vld [vmem:[#allocation2 + $0xcc] sm:$0xff]
    %v73 = vld [vmem:[#allocation2 + $0xd4] sm:$0xf]
    %v74 = vld [vmem:[#allocation2 + $0xd8] sm:$0xff]
    %v75 = vld [vmem:[#allocation2 + $0xe0] sm:$0xff]
    %v76 = vld [vmem:[#allocation2 + $0xe8] sm:$0xff]
    %v77 = vld [vmem:[#allocation2 + $0xf0] sm:$0xff]
    %v78 = vld [vmem:[#allocation2 + $0xf8] sm:$0xf]
    %v79 = vld [vmem:[#allocation2 + $0xfc] sm:$0xff]
    %v80 = vld [vmem:[#allocation2 + $0x104] sm:$0xff]
    %v81 = vld [vmem:[#allocation2 + $0x10c] sm:$0xff]
    %v82 = vld [vmem:[#allocation2 + $0x114] sm:$0xff]
    %v83 = vld [vmem:[#allocation2 + $0x11c] sm:$0xf]
    %v84 = vld [vmem:[#allocation2 + $0x120] sm:$0xff]
    %v85 = vld [vmem:[#allocation2 + $0x128] sm:$0xff]
    %v86 = vld [vmem:[#allocation2 + $0x130] sm:$0xff]
    %v87 = vld [vmem:[#allocation2 + $0x138] sm:$0xff]
    %v88 = vld [vmem:[#allocation2 + $0x140] sm:$0xf]
    %v89 = vld [vmem:[#allocation2 + $0x144] sm:$0xff]
    %v90 = vld [vmem:[#allocation2 + $0x14c] sm:$0xff]
    %v91 = vld [vmem:[#allocation2 + $0x154] sm:$0xff]
    %v92 = vld [vmem:[#allocation2 + $0x15c] sm:$0xff]
    %v93 = vld [vmem:[#allocation2 + $0x164] sm:$0xf]
    %v94 = vld [vmem:[#allocation2 + $0x168] sm:$0xff]
    %v95 = vld [vmem:[#allocation2 + $0x170] sm:$0xff]
    %v96 = vld [vmem:[#allocation2 + $0x178] sm:$0xff]
    %v97 = vld [vmem:[#allocation2 + $0x180] sm:$0xff]
    %v98 = vld [vmem:[#allocation2 + $0x188] sm:$0xf]
    %v99 = vld [vmem:[#allocation2 + $0x18c] sm:$0xff]
    %v100 = vld [vmem:[#allocation2 + $0x194] sm:$0xff]
    %v101 = vld [vmem:[#allocation2 + $0x19c] sm:$0xff]
    %v102 = vld [vmem:[#allocation2 + $0x1a4] sm:$0xff]
    %v103 = vld [vmem:[#allocation2 + $0x1ac] sm:$0xf]
    %v104 = vld [vmem:[#allocation2 + $0x1b0] sm:$0xff]
    %v105 = vld [vmem:[#allocation2 + $0x1b8] sm:$0xff]
    %v106 = vld [vmem:[#allocation2 + $0x1c0] sm:$0xff]
    %v107 = vld [vmem:[#allocation2 + $0x1c8] sm:$0xff]
    %v108 = vld [vmem:[#allocation2 + $0x1d0] sm:$0xf]
    %v109 = vld [vmem:[#allocation2 + $0x1d4] sm:$0xff]
    %v110 = vld [vmem:[#allocation2 + $0x1dc] sm:$0xff]
    %v111 = vld [vmem:[#allocation2 + $0x1e4] sm:$0xff]
    %v112 = vld [vmem:[#allocation2 + $0x1ec] sm:$0xff]
    %v113 = vld [vmem:[#allocation2 + $0x1f4] sm:$0xf]
    %v114 = vld [vmem:[#allocation2 + $0x1f8] sm:$0xff]
    %v115 = vld [vmem:[#allocation2 + $0x200] sm:$0xff]
    %v116 = vld [vmem:[#allocation2 + $0x208] sm:$0xff]
    %v117 = vld [vmem:[#allocation2 + $0x210] sm:$0xff]
    %v118 = vld [vmem:[#allocation2 + $0x218] sm:$0xf]
    %v119 = vld [vmem:[#allocation2 + $0x21c] sm:$0xff]
    %v120 = vld [vmem:[#allocation2 + $0x224] sm:$0xff]
    %v121 = vld [vmem:[#allocation2 + $0x22c] sm:$0xff]
    %v122 = vld [vmem:[#allocation2 + $0x234] sm:$0xff]
    %v123 = vld [vmem:[#allocation2 + $0x23c] sm:$0xf]
    %v124 = vld [vmem:[#allocation2 + $0x240] sm:$0xff]
    %v125 = vld [vmem:[#allocation2 + $0x248] sm:$0xff]
    %v126 = vld [vmem:[#allocation2 + $0x250] sm:$0xff]
    %v127 = vld [vmem:[#allocation2 + $0x258] sm:$0xff]
    %v128 = vld [vmem:[#allocation2 + $0x260] sm:$0xf]
    %v129 = vld [vmem:[#allocation2 + $0x264] sm:$0xff]
    %v130 = vld [vmem:[#allocation2 + $0x26c] sm:$0xff]
    %v131 = vld [vmem:[#allocation2 + $0x274] sm:$0xff]
    %v132 = vld [vmem:[#allocation2 + $0x27c] sm:$0xff]
    %v133 = vld [vmem:[#allocation2 + $0x284] sm:$0xf]
    %v134 = vld [vmem:[#allocation2 + $0x288] sm:$0xff]
    %v135 = vld [vmem:[#allocation2 + $0x290] sm:$0xff]
    %v136 = vld [vmem:[#allocation2 + $0x298] sm:$0xff]
    %v137 = vld [vmem:[#allocation2 + $0x2a0] sm:$0xff]
    %v138 = vld [vmem:[#allocation2 + $0x2a8] sm:$0xf]
    %v139 = vld [vmem:[#allocation2 + $0x2ac] sm:$0xff]
    %v140 = vld [vmem:[#allocation2 + $0x2b4] sm:$0xff]
    %v141 = vld [vmem:[#allocation2 + $0x2bc] sm:$0xff]
    %v142 = vld [vmem:[#allocation2 + $0x2c4] sm:$0xff]
    %v143 = vld [vmem:[#allocation2 + $0x2cc] sm:$0xf]
    %v144 = vld [vmem:[#allocation2 + $0x2d0] sm:$0xff]
    %v145 = vld [vmem:[#allocation2 + $0x2d8] sm:$0xff]
    %v146 = vld [vmem:[#allocation2 + $0x2e0] sm:$0xff]
    %v147 = vld [vmem:[#allocation2 + $0x2e8] sm:$0xff]
    %v148 = vld [vmem:[#allocation2 + $0x2f0] sm:$0xf]
    %v149 = vld [vmem:[#allocation2 + $0x2f4] sm:$0xff]
    %v150 = vld [vmem:[#allocation2 + $0x2fc] sm:$0xff]
    %v151 = vld [vmem:[#allocation2 + $0x304] sm:$0xff]
    %v152 = vld [vmem:[#allocation2 + $0x30c] sm:$0xff]
    %v153 = vld [vmem:[#allocation2 + $0x314] sm:$0xf]
    %v154 = vld [vmem:[#allocation2 + $0x318] sm:$0xff]
    %v155 = vld [vmem:[#allocation2 + $0x320] sm:$0xff]
    %v156 = vld [vmem:[#allocation2 + $0x328] sm:$0xff]
    %v157 = vld [vmem:[#allocation2 + $0x330] sm:$0xff]
    %v158 = vld [vmem:[#allocation2 + $0x338] sm:$0xf]
    %v159 = vld [vmem:[#allocation2 + $0x33c] sm:$0xff]
    %v160 = vld [vmem:[#allocation2 + $0x344] sm:$0xff]
    %v161 = vld [vmem:[#allocation2 + $0x34c] sm:$0xff]
    %v162 = vld [vmem:[#allocation2 + $0x354] sm:$0xff]
    %v163 = vld [vmem:[#allocation2 + $0x35c] sm:$0xf]
    %v164 = vld [vmem:[#allocation2 + $0x360] sm:$0xff]
    %v165 = vld [vmem:[#allocation2 + $0x368] sm:$0xff]
    %v166 = vld [vmem:[#allocation2 + $0x370] sm:$0xff]
    %v167 = vld [vmem:[#allocation2 + $0x378] sm:$0xff]
    %v168 = vld [vmem:[#allocation2 + $0x380] sm:$0xf]
    %v169 = vld [vmem:[#allocation2 + $0x384] sm:$0xff]
    %v170 = vld [vmem:[#allocation2 + $0x38c] sm:$0xff]
    %v171 = vld [vmem:[#allocation2 + $0x394] sm:$0xff]
    %v172 = vld [vmem:[#allocation2 + $0x39c] sm:$0xff]
    %v173 = vld [vmem:[#allocation2 + $0x3a4] sm:$0xf]
    %v174 = vld [vmem:[#allocation2 + $0x3a8] sm:$0xff]
    %v175 = vld [vmem:[#allocation2 + $0x3b0] sm:$0xff]
    %v176 = vld [vmem:[#allocation2 + $0x3b8] sm:$0xff]
    %v177 = vld [vmem:[#allocation2 + $0x3c0] sm:$0xff]
    %v178 = vld [vmem:[#allocation2 + $0x3c8] sm:$0xf]
    %v179 = vld [vmem:[#allocation2 + $0x3cc] sm:$0xff]
    %v180 = vld [vmem:[#allocation2 + $0x3d4] sm:$0xff]
    %v181 = vld [vmem:[#allocation2 + $0x3dc] sm:$0xff]
    %v182 = vld [vmem:[#allocation2 + $0x3e4] sm:$0xff]
    %v183 = vld [vmem:[#allocation2 + $0x3ec] sm:$0xf]
    %v184 = vld [vmem:[#allocation2 + $0x3f0] sm:$0xff]
    %v185 = vld [vmem:[#allocation2 + $0x3f8] sm:$0xff]
    %v186 = vld [vmem:[#allocation2 + $0x400] sm:$0xff]
    %v187 = vld [vmem:[#allocation2 + $0x408] sm:$0xff]
    %v188 = vld [vmem:[#allocation2 + $0x410] sm:$0xf]
    %v189 = vld [vmem:[#allocation2 + $0x414] sm:$0xff]
    %v190 = vld [vmem:[#allocation2 + $0x41c] sm:$0xff]
    %v191 = vld [vmem:[#allocation2 + $0x424] sm:$0xff]
    %v192 = vld [vmem:[#allocation2 + $0x42c] sm:$0xff]
    %v193 = vld [vmem:[#allocation2 + $0x434] sm:$0xf]
    %v194 = vld [vmem:[#allocation2 + $0x438] sm:$0xff]
    %v195 = vld [vmem:[#allocation2 + $0x440] sm:$0xff]
    %v196 = vld [vmem:[#allocation2 + $0x448] sm:$0xff]
    %v197 = vld [vmem:[#allocation2 + $0x450] sm:$0xff]
    %v198 = vld [vmem:[#allocation2 + $0x458] sm:$0xf]
    %v199 = vld [vmem:[#allocation2 + $0x45c] sm:$0xff]
    %v200 = vld [vmem:[#allocation2 + $0x464] sm:$0xff]
    %v201 = vld [vmem:[#allocation2 + $0x46c] sm:$0xff]
    %v202 = vld [vmem:[#allocation2 + $0x474] sm:$0xff]
    %v203 = vld [vmem:[#allocation2 + $0x47c] sm:$0xf]
    %v204 = vld [vmem:[#allocation2 + $0x480] sm:$0xff]
    %v205 = vld [vmem:[#allocation2 + $0x488] sm:$0xff]
    %v206 = vld [vmem:[#allocation2 + $0x490] sm:$0xff]
    %v207 = vld [vmem:[#allocation2 + $0x498] sm:$0xff]
    %v208 = vld [vmem:[#allocation2 + $0x4a0] sm:$0xf]
    %v209 = vld [vmem:[#allocation2 + $0x4a4] sm:$0xff]
    %v210 = vld [vmem:[#allocation2 + $0x4ac] sm:$0xff]
    %v211 = vld [vmem:[#allocation2 + $0x4b4] sm:$0xff]
    %v212 = vld [vmem:[#allocation2 + $0x4bc] sm:$0xff]
    %v213 = vld [vmem:[#allocation2 + $0x4c4] sm:$0xf]
    %v214 = vld [vmem:[#allocation2 + $0x4c8] sm:$0xff]
    %v215 = vld [vmem:[#allocation2 + $0x4d0] sm:$0xff]
    %v216 = vld [vmem:[#allocation2 + $0x4d8] sm:$0xff]
    %v217 = vld [vmem:[#allocation2 + $0x4e0] sm:$0xff]
    %v218 = vld [vmem:[#allocation2 + $0x4e8] sm:$0xf]
    %v219 = vld [vmem:[#allocation2 + $0x4ec] sm:$0xff]
    %v220 = vld [vmem:[#allocation2 + $0x4f4] sm:$0xff]
    %v221 = vld [vmem:[#allocation2 + $0x4fc] sm:$0xff]
    %v222 = vld [vmem:[#allocation2 + $0x504] sm:$0xff]
    %v223 = vld [vmem:[#allocation2 + $0x50c] sm:$0xf]
    %v224 = vld [vmem:[#allocation2 + $0x510] sm:$0xff]
    %v225 = vld [vmem:[#allocation2 + $0x518] sm:$0xff]
    %v226 = vld [vmem:[#allocation2 + $0x520] sm:$0xff]
    %v227 = vld [vmem:[#allocation2 + $0x528] sm:$0xff]
    %v228 = vld [vmem:[#allocation2 + $0x530] sm:$0xf]
    %v229 = vld [vmem:[#allocation2 + $0x534] sm:$0xff]
    %v230 = vld [vmem:[#allocation2 + $0x53c] sm:$0xff]
    %v231 = vld [vmem:[#allocation2 + $0x544] sm:$0xff]
    %v232 = vld [vmem:[#allocation2 + $0x54c] sm:$0xff]
    %v233 = vld [vmem:[#allocation2 + $0x554] sm:$0xf]
    %v234 = vld [vmem:[#allocation2 + $0x558] sm:$0xff]
    %v235 = vld [vmem:[#allocation2 + $0x560] sm:$0xff]
    %v236 = vld [vmem:[#allocation2 + $0x568] sm:$0xff]
    %v237 = vld [vmem:[#allocation2 + $0x570] sm:$0xff]
    %v238 = vld [vmem:[#allocation2 + $0x578] sm:$0xf]
    %v239 = vld [vmem:[#allocation2 + $0x57c] sm:$0xff]
    %v240 = vld [vmem:[#allocation2 + $0x584] sm:$0xff]
    %v241 = vld [vmem:[#allocation2 + $0x58c] sm:$0xff]
    %v242 = vld [vmem:[#allocation2 + $0x594] sm:$0xff]
    %v243 = vld [vmem:[#allocation2 + $0x59c] sm:$0xf]
    %v244 = vld [vmem:[#allocation2 + $0x5a0] sm:$0xff]
    %v245 = vld [vmem:[#allocation2 + $0x5a8] sm:$0xff]
    %v246 = vld [vmem:[#allocation2 + $0x5b0] sm:$0xff]
    %v247 = vld [vmem:[#allocation2 + $0x5b8] sm:$0xff]
    %v248 = vld [vmem:[#allocation2 + $0x5c0] sm:$0xf]
    %v249 = vld [vmem:[#allocation2 + $0x5c4] sm:$0xff]
    %v250 = vld [vmem:[#allocation2 + $0x5cc] sm:$0xff]
    %v251 = vld [vmem:[#allocation2 + $0x5d4] sm:$0xff]
    %v252 = vld [vmem:[#allocation2 + $0x5dc] sm:$0xff]
    %v253 = vld [vmem:[#allocation2 + $0x5e4] sm:$0xf]
    %v254 = vld [vmem:[#allocation2 + $0x5e8] sm:$0xff]
    %v255 = vld [vmem:[#allocation2 + $0x5f0] sm:$0xff]
    %v256 = vld [vmem:[#allocation2 + $0x5f8] sm:$0xff]
    %v257 = vld [vmem:[#allocation2 + $0x600] sm:$0xff]
    %v258 = vld [vmem:[#allocation2 + $0x608] sm:$0xf]
    %v259 = vld [vmem:[#allocation2 + $0x60c] sm:$0xff]
    %v260 = vld [vmem:[#allocation2 + $0x614] sm:$0xff]
    %v261 = vld [vmem:[#allocation2 + $0x61c] sm:$0xff]
    %v262 = vld [vmem:[#allocation2 + $0x624] sm:$0xff]
    %v263 = vld [vmem:[#allocation2 + $0x62c] sm:$0xf]
    %v264 = vld [vmem:[#allocation2 + $0x630] sm:$0xff]
    %v265 = vld [vmem:[#allocation2 + $0x638] sm:$0xff]
    %v266 = vld [vmem:[#allocation2 + $0x640] sm:$0xff]
    %v267 = vld [vmem:[#allocation2 + $0x648] sm:$0xff]
    %v268 = vld [vmem:[#allocation2 + $0x650] sm:$0xf]
    %v269 = vld [vmem:[#allocation2 + $0x654] sm:$0xff]
    %v270 = vld [vmem:[#allocation2 + $0x65c] sm:$0xff]
    %v271 = vld [vmem:[#allocation2 + $0x664] sm:$0xff]
    %v272 = vld [vmem:[#allocation2 + $0x66c] sm:$0xff]
    %v273 = vld [vmem:[#allocation2 + $0x674] sm:$0xf]
    %v274 = vld [vmem:[#allocation2 + $0x678] sm:$0xff]
    %v275 = vld [vmem:[#allocation2 + $0x680] sm:$0xff]
    %v276 = vld [vmem:[#allocation2 + $0x688] sm:$0xff]
    %v277 = vld [vmem:[#allocation2 + $0x690] sm:$0xff]
    %v278 = vld [vmem:[#allocation2 + $0x698] sm:$0xf]
    %v279 = vld [vmem:[#allocation2 + $0x69c] sm:$0xff]
    %v280 = vld [vmem:[#allocation2 + $0x6a4] sm:$0xff]
    %v281 = vld [vmem:[#allocation2 + $0x6ac] sm:$0xff]
    %v282 = vld [vmem:[#allocation2 + $0x6b4] sm:$0xff]
    %v283 = vld [vmem:[#allocation2 + $0x6bc] sm:$0xf]
    %v284 = vld [vmem:[#allocation2 + $0x6c0] sm:$0xff]
    %v285 = vld [vmem:[#allocation2 + $0x6c8] sm:$0xff]
    %v286 = vld [vmem:[#allocation2 + $0x6d0] sm:$0xff]
    %v287 = vld [vmem:[#allocation2 + $0x6d8] sm:$0xff]
    %v288 = vld [vmem:[#allocation2 + $0x6e0] sm:$0xf]
    %v289 = vld [vmem:[#allocation2 + $0x6e4] sm:$0xff]
    %v290 = vld [vmem:[#allocation2 + $0x6ec] sm:$0xff]
    %v291 = vld [vmem:[#allocation2 + $0x6f4] sm:$0xff]
    %v292 = vld [vmem:[#allocation2 + $0x6fc] sm:$0xff]
    %v293 = vld [vmem:[#allocation2 + $0x704] sm:$0xf]
    %v294 = vld [vmem:[%s2] sm:$0xff]
    %v295 = vld [vmem:[%s2 + $0x8] sm:$0x1]
    %v298 = vlaneseq
    %v299 = vshrl.u32 %v298, 7
    %v300 = vsub.s32 0, %v299
    %v301 = vrot.slane %v294, %v300
    %v302 = vlaneseq
    %v303 = vshrl.u32 %v302, 7
    %v304 = vsub.s32 1, %v303
    %v305 = vrot.slane %v294, %v304
    %v306 = vlaneseq
    %v307 = vshrl.u32 %v306, 7
    %v308 = vsub.s32 2, %v307
    %v309 = vrot.slane %v294, %v308
    %v310 = vlaneseq
    %v311 = vshrl.u32 %v310, 7
    %v312 = vsub.s32 3, %v311
    %v313 = vrot.slane %v294, %v312
    %v314 = vlaneseq
    %v315 = vshrl.u32 %v314, 7
    %v316 = vsub.s32 4, %v315
    %v317 = vrot.slane %v294, %v316
    %v318 = vlaneseq
    %v319 = vshrl.u32 %v318, 7
    %v320 = vsub.s32 5, %v319
    %v321 = vrot.slane %v294, %v320
    %v322 = vlaneseq
    %v323 = vshrl.u32 %v322, 7
    %v324 = vsub.s32 6, %v323
    %v325 = vrot.slane %v294, %v324
    %v326 = vlaneseq
    %v327 = vshrl.u32 %v326, 7
    %v328 = vsub.s32 7, %v327
    %v329 = vrot.slane %v294, %v328
    %v330 = vlaneseq
    %v331 = vshrl.u32 %v330, 7
    %v332 = vsub.s32 0, %v331
    %v333 = vrot.slane %v295, %v332
    %v345 = vunpack.c.l.b16 %v42
    %v346 = vunpack.c.h.b16 %v42
    %v347 = vunpack.c.l.b16 %v43
    %v348 = vunpack.c.h.b16 %v43
    %v349 = vpack.c.b16 %v345, %v345
    %v350 = vpack.c.b16 %v346, %v346
    %v351 = vpack.c.b16 %v347, %v347
    %v352 = vpack.c.b16 %v348, %v348
    %v606 = vunpack.c.l.b16 %v44
    %v607 = vunpack.c.h.b16 %v44
    %v608 = vunpack.c.l.b16 %v45
    %v609 = vunpack.c.h.b16 %v45
    %v610 = vunpack.c.l.b16 %v46
    %v611 = vunpack.c.h.b16 %v46
    %v612 = vunpack.c.l.b16 %v47
    %v613 = vunpack.c.h.b16 %v47
    %v614 = vunpack.c.l.b16 %v48
    %v615 = vunpack.c.l.b16 %v49
    %v616 = vunpack.c.h.b16 %v49
    %v617 = vunpack.c.l.b16 %v50
    %v618 = vunpack.c.h.b16 %v50
    %v619 = vunpack.c.l.b16 %v51
    %v620 = vunpack.c.h.b16 %v51
    %v621 = vunpack.c.l.b16 %v52
    %v622 = vunpack.c.h.b16 %v52
    %v623 = vunpack.c.l.b16 %v53
    %v624 = vunpack.c.l.b16 %v54
    %v625 = vunpack.c.h.b16 %v54
    %v626 = vunpack.c.l.b16 %v55
    %v627 = vunpack.c.h.b16 %v55
    %v628 = vunpack.c.l.b16 %v56
    %v629 = vunpack.c.h.b16 %v56
    %v630 = vunpack.c.l.b16 %v57
    %v631 = vunpack.c.h.b16 %v57
    %v632 = vunpack.c.l.b16 %v58
    %v633 = vunpack.c.l.b16 %v59
    %v634 = vunpack.c.h.b16 %v59
    %v635 = vunpack.c.l.b16 %v60
    %v636 = vunpack.c.h.b16 %v60
    %v637 = vunpack.c.l.b16 %v61
    %v638 = vunpack.c.h.b16 %v61
    %v639 = vunpack.c.l.b16 %v62
    %v640 = vunpack.c.h.b16 %v62
    %v641 = vunpack.c.l.b16 %v63
    %v642 = vunpack.c.l.b16 %v64
    %v643 = vunpack.c.h.b16 %v64
    %v644 = vunpack.c.l.b16 %v65
    %v645 = vunpack.c.h.b16 %v65
    %v646 = vunpack.c.l.b16 %v66
    %v647 = vunpack.c.h.b16 %v66
    %v648 = vunpack.c.l.b16 %v67
    %v649 = vunpack.c.h.b16 %v67
    %v650 = vunpack.c.l.b16 %v68
    %v651 = vunpack.c.l.b16 %v69
    %v652 = vunpack.c.h.b16 %v69
    %v653 = vunpack.c.l.b16 %v70
    %v654 = vunpack.c.h.b16 %v70
    %v655 = vunpack.c.l.b16 %v71
    %v656 = vunpack.c.h.b16 %v71
    %v657 = vunpack.c.l.b16 %v72
    %v658 = vunpack.c.h.b16 %v72
    %v659 = vunpack.c.l.b16 %v73
    %v660 = vunpack.c.l.b16 %v74
    %v661 = vunpack.c.h.b16 %v74
    %v662 = vunpack.c.l.b16 %v75
    %v663 = vunpack.c.h.b16 %v75
    %v664 = vunpack.c.l.b16 %v76
    %v665 = vunpack.c.h.b16 %v76
    %v666 = vunpack.c.l.b16 %v77
    %v667 = vunpack.c.h.b16 %v77
    %v668 = vunpack.c.l.b16 %v78
    %v669 = vunpack.c.l.b16 %v79
    %v670 = vunpack.c.h.b16 %v79
    %v671 = vunpack.c.l.b16 %v80
    %v672 = vunpack.c.h.b16 %v80
    %v673 = vunpack.c.l.b16 %v81
    %v674 = vunpack.c.h.b16 %v81
    %v675 = vunpack.c.l.b16 %v82
    %v676 = vunpack.c.h.b16 %v82
    %v677 = vunpack.c.l.b16 %v83
    %v678 = vunpack.c.l.b16 %v84
    %v679 = vunpack.c.h.b16 %v84
    %v680 = vunpack.c.l.b16 %v85
    %v681 = vunpack.c.h.b16 %v85
    %v682 = vunpack.c.l.b16 %v86
    %v683 = vunpack.c.h.b16 %v86
    %v684 = vunpack.c.l.b16 %v87
    %v685 = vunpack.c.h.b16 %v87
    %v686 = vunpack.c.l.b16 %v88
    %v687 = vunpack.c.l.b16 %v89
    %v688 = vunpack.c.h.b16 %v89
    %v689 = vunpack.c.l.b16 %v90
    %v690 = vunpack.c.h.b16 %v90
    %v691 = vunpack.c.l.b16 %v91
    %v692 = vunpack.c.h.b16 %v91
    %v693 = vunpack.c.l.b16 %v92
    %v694 = vunpack.c.h.b16 %v92
    %v695 = vunpack.c.l.b16 %v93
    %v696 = vunpack.c.l.b16 %v94
    %v697 = vunpack.c.h.b16 %v94
    %v698 = vunpack.c.l.b16 %v95
    %v699 = vunpack.c.h.b16 %v95
    %v700 = vunpack.c.l.b16 %v96
    %v701 = vunpack.c.h.b16 %v96
    %v702 = vunpack.c.l.b16 %v97
    %v703 = vunpack.c.h.b16 %v97
    %v704 = vunpack.c.l.b16 %v98
    %v705 = vunpack.c.l.b16 %v99
    %v706 = vunpack.c.h.b16 %v99
    %v707 = vunpack.c.l.b16 %v100
    %v708 = vunpack.c.h.b16 %v100
    %v709 = vunpack.c.l.b16 %v101
    %v710 = vunpack.c.h.b16 %v101
    %v711 = vunpack.c.l.b16 %v102
    %v712 = vunpack.c.h.b16 %v102
    %v713 = vunpack.c.l.b16 %v103
    %v714 = vunpack.c.l.b16 %v104
    %v715 = vunpack.c.h.b16 %v104
    %v716 = vunpack.c.l.b16 %v105
    %v717 = vunpack.c.h.b16 %v105
    %v718 = vunpack.c.l.b16 %v106
    %v719 = vunpack.c.h.b16 %v106
    %v720 = vunpack.c.l.b16 %v107
    %v721 = vunpack.c.h.b16 %v107
    %v722 = vunpack.c.l.b16 %v108
    %v723 = vunpack.c.l.b16 %v109
    %v724 = vunpack.c.h.b16 %v109
    %v725 = vunpack.c.l.b16 %v110
    %v726 = vunpack.c.h.b16 %v110
    %v727 = vunpack.c.l.b16 %v111
    %v728 = vunpack.c.h.b16 %v111
    %v729 = vunpack.c.l.b16 %v112
    %v730 = vunpack.c.h.b16 %v112
    %v731 = vunpack.c.l.b16 %v113
    %v732 = vunpack.c.l.b16 %v114
    %v733 = vunpack.c.h.b16 %v114
    %v734 = vunpack.c.l.b16 %v115
    %v735 = vunpack.c.h.b16 %v115
    %v736 = vunpack.c.l.b16 %v116
    %v737 = vunpack.c.h.b16 %v116
    %v738 = vunpack.c.l.b16 %v117
    %v739 = vunpack.c.h.b16 %v117
    %v740 = vunpack.c.l.b16 %v118
    %v741 = vunpack.c.l.b16 %v119
    %v742 = vunpack.c.h.b16 %v119
    %v743 = vunpack.c.l.b16 %v120
    %v744 = vunpack.c.h.b16 %v120
    %v745 = vunpack.c.l.b16 %v121
    %v746 = vunpack.c.h.b16 %v121
    %v747 = vunpack.c.l.b16 %v122
    %v748 = vunpack.c.h.b16 %v122
    %v749 = vunpack.c.l.b16 %v123
    %v750 = vunpack.c.l.b16 %v124
    %v751 = vunpack.c.h.b16 %v124
    %v752 = vunpack.c.l.b16 %v125
    %v753 = vunpack.c.h.b16 %v125
    %v754 = vunpack.c.l.b16 %v126
    %v755 = vunpack.c.h.b16 %v126
    %v756 = vunpack.c.l.b16 %v127
    %v757 = vunpack.c.h.b16 %v127
    %v758 = vunpack.c.l.b16 %v128
    %v759 = vunpack.c.l.b16 %v129
    %v760 = vunpack.c.h.b16 %v129
    %v761 = vunpack.c.l.b16 %v130
    %v762 = vunpack.c.h.b16 %v130
    %v763 = vunpack.c.l.b16 %v131
    %v764 = vunpack.c.h.b16 %v131
    %v765 = vunpack.c.l.b16 %v132
    %v766 = vunpack.c.h.b16 %v132
    %v767 = vunpack.c.l.b16 %v133
    %v768 = vunpack.c.l.b16 %v134
    %v769 = vunpack.c.h.b16 %v134
    %v770 = vunpack.c.l.b16 %v135
    %v771 = vunpack.c.h.b16 %v135
    %v772 = vunpack.c.l.b16 %v136
    %v773 = vunpack.c.h.b16 %v136
    %v774 = vunpack.c.l.b16 %v137
    %v775 = vunpack.c.h.b16 %v137
    %v776 = vunpack.c.l.b16 %v138
    %v777 = vunpack.c.l.b16 %v139
    %v778 = vunpack.c.h.b16 %v139
    %v779 = vunpack.c.l.b16 %v140
    %v780 = vunpack.c.h.b16 %v140
    %v781 = vunpack.c.l.b16 %v141
    %v782 = vunpack.c.h.b16 %v141
    %v783 = vunpack.c.l.b16 %v142
    %v784 = vunpack.c.h.b16 %v142
    %v785 = vunpack.c.l.b16 %v143
    %v786 = vunpack.c.l.b16 %v144
    %v787 = vunpack.c.h.b16 %v144
    %v788 = vunpack.c.l.b16 %v145
    %v789 = vunpack.c.h.b16 %v145
    %v790 = vunpack.c.l.b16 %v146
    %v791 = vunpack.c.h.b16 %v146
    %v792 = vunpack.c.l.b16 %v147
    %v793 = vunpack.c.h.b16 %v147
    %v794 = vunpack.c.l.b16 %v148
    %v795 = vunpack.c.l.b16 %v149
    %v796 = vunpack.c.h.b16 %v149
    %v797 = vunpack.c.l.b16 %v150
    %v798 = vunpack.c.h.b16 %v150
    %v799 = vunpack.c.l.b16 %v151
    %v800 = vunpack.c.h.b16 %v151
    %v801 = vunpack.c.l.b16 %v152
    %v802 = vunpack.c.h.b16 %v152
    %v803 = vunpack.c.l.b16 %v153
    %v804 = vunpack.c.l.b16 %v154
    %v805 = vunpack.c.h.b16 %v154
    %v806 = vunpack.c.l.b16 %v155
    %v807 = vunpack.c.h.b16 %v155
    %v808 = vunpack.c.l.b16 %v156
    %v809 = vunpack.c.h.b16 %v156
    %v810 = vunpack.c.l.b16 %v157
    %v811 = vunpack.c.h.b16 %v157
    %v812 = vunpack.c.l.b16 %v158
    %v813 = vunpack.c.l.b16 %v159
    %v814 = vunpack.c.h.b16 %v159
    %v815 = vunpack.c.l.b16 %v160
    %v816 = vunpack.c.h.b16 %v160
    %v817 = vunpack.c.l.b16 %v161
    %v818 = vunpack.c.h.b16 %v161
    %v819 = vunpack.c.l.b16 %v162
    %v820 = vunpack.c.h.b16 %v162
    %v821 = vunpack.c.l.b16 %v163
    %v822 = vunpack.c.l.b16 %v164
    %v823 = vunpack.c.h.b16 %v164
    %v824 = vunpack.c.l.b16 %v165
    %v825 = vunpack.c.h.b16 %v165
    %v826 = vunpack.c.l.b16 %v166
    %v827 = vunpack.c.h.b16 %v166
    %v828 = vunpack.c.l.b16 %v167
    %v829 = vunpack.c.h.b16 %v167
    %v830 = vunpack.c.l.b16 %v168
    %v831 = vunpack.c.l.b16 %v169
    %v832 = vunpack.c.h.b16 %v169
    %v833 = vunpack.c.l.b16 %v170
    %v834 = vunpack.c.h.b16 %v170
    %v835 = vunpack.c.l.b16 %v171
    %v836 = vunpack.c.h.b16 %v171
    %v837 = vunpack.c.l.b16 %v172
    %v838 = vunpack.c.h.b16 %v172
    %v839 = vunpack.c.l.b16 %v173
    %v840 = vunpack.c.l.b16 %v174
    %v841 = vunpack.c.h.b16 %v174
    %v842 = vunpack.c.l.b16 %v175
    %v843 = vunpack.c.h.b16 %v175
    %v844 = vunpack.c.l.b16 %v176
    %v845 = vunpack.c.h.b16 %v176
    %v846 = vunpack.c.l.b16 %v177
    %v847 = vunpack.c.h.b16 %v177
    %v848 = vunpack.c.l.b16 %v178
    %v849 = vunpack.c.l.b16 %v179
    %v850 = vunpack.c.h.b16 %v179
    %v851 = vunpack.c.l.b16 %v180
    %v852 = vunpack.c.h.b16 %v180
    %v853 = vunpack.c.l.b16 %v181
    %v854 = vunpack.c.h.b16 %v181
    %v855 = vunpack.c.l.b16 %v182
    %v856 = vunpack.c.h.b16 %v182
    %v857 = vunpack.c.l.b16 %v183
    %v858 = vunpack.c.l.b16 %v184
    %v859 = vunpack.c.h.b16 %v184
    %v860 = vunpack.c.l.b16 %v185
    %v861 = vunpack.c.h.b16 %v185
    %v862 = vunpack.c.l.b16 %v186
    %v863 = vunpack.c.h.b16 %v186
    %v864 = vunpack.c.l.b16 %v187
    %v865 = vunpack.c.h.b16 %v187
    %v866 = vunpack.c.l.b16 %v188
    %v867 = vunpack.c.l.b16 %v189
    %v868 = vunpack.c.h.b16 %v189
    %v869 = vunpack.c.l.b16 %v190
    %v870 = vunpack.c.h.b16 %v190
    %v871 = vunpack.c.l.b16 %v191
    %v872 = vunpack.c.h.b16 %v191
    %v873 = vunpack.c.l.b16 %v192
    %v874 = vunpack.c.h.b16 %v192
    %v875 = vunpack.c.l.b16 %v193
    %v876 = vunpack.c.l.b16 %v194
    %v877 = vunpack.c.h.b16 %v194
    %v878 = vunpack.c.l.b16 %v195
    %v879 = vunpack.c.h.b16 %v195
    %v880 = vunpack.c.l.b16 %v196
    %v881 = vunpack.c.h.b16 %v196
    %v882 = vunpack.c.l.b16 %v197
    %v883 = vunpack.c.h.b16 %v197
    %v884 = vunpack.c.l.b16 %v198
    %v885 = vunpack.c.l.b16 %v199
    %v886 = vunpack.c.h.b16 %v199
    %v887 = vunpack.c.l.b16 %v200
    %v888 = vunpack.c.h.b16 %v200
    %v889 = vunpack.c.l.b16 %v201
    %v890 = vunpack.c.h.b16 %v201
    %v891 = vunpack.c.l.b16 %v202
    %v892 = vunpack.c.h.b16 %v202
    %v893 = vunpack.c.l.b16 %v203
    %v894 = vunpack.c.l.b16 %v204
    %v895 = vunpack.c.h.b16 %v204
    %v896 = vunpack.c.l.b16 %v205
    %v897 = vunpack.c.h.b16 %v205
    %v898 = vunpack.c.l.b16 %v206
    %v899 = vunpack.c.h.b16 %v206
    %v900 = vunpack.c.l.b16 %v207
    %v901 = vunpack.c.h.b16 %v207
    %v902 = vunpack.c.l.b16 %v208
    %v903 = vunpack.c.l.b16 %v209
    %v904 = vunpack.c.h.b16 %v209
    %v905 = vunpack.c.l.b16 %v210
    %v906 = vunpack.c.h.b16 %v210
    %v907 = vunpack.c.l.b16 %v211
    %v908 = vunpack.c.h.b16 %v211
    %v909 = vunpack.c.l.b16 %v212
    %v910 = vunpack.c.h.b16 %v212
    %v911 = vunpack.c.l.b16 %v213
    %v912 = vunpack.c.l.b16 %v214
    %v913 = vunpack.c.h.b16 %v214
    %v914 = vunpack.c.l.b16 %v215
    %v915 = vunpack.c.h.b16 %v215
    %v916 = vunpack.c.l.b16 %v216
    %v917 = vunpack.c.h.b16 %v216
    %v918 = vunpack.c.l.b16 %v217
    %v919 = vunpack.c.h.b16 %v217
    %v920 = vunpack.c.l.b16 %v218
    %v921 = vunpack.c.l.b16 %v219
    %v922 = vunpack.c.h.b16 %v219
    %v923 = vunpack.c.l.b16 %v220
    %v924 = vunpack.c.h.b16 %v220
    %v925 = vunpack.c.l.b16 %v221
    %v926 = vunpack.c.h.b16 %v221
    %v927 = vunpack.c.l.b16 %v222
    %v928 = vunpack.c.h.b16 %v222
    %v929 = vunpack.c.l.b16 %v223
    %v930 = vunpack.c.l.b16 %v224
    %v931 = vunpack.c.h.b16 %v224
    %v932 = vunpack.c.l.b16 %v225
    %v933 = vunpack.c.h.b16 %v225
    %v934 = vunpack.c.l.b16 %v226
    %v935 = vunpack.c.h.b16 %v226
    %v936 = vunpack.c.l.b16 %v227
    %v937 = vunpack.c.h.b16 %v227
    %v938 = vunpack.c.l.b16 %v228
    %v939 = vunpack.c.l.b16 %v229
    %v940 = vunpack.c.h.b16 %v229
    %v941 = vunpack.c.l.b16 %v230
    %v942 = vunpack.c.h.b16 %v230
    %v943 = vunpack.c.l.b16 %v231
    %v944 = vunpack.c.h.b16 %v231
    %v945 = vunpack.c.l.b16 %v232
    %v946 = vunpack.c.h.b16 %v232
    %v947 = vunpack.c.l.b16 %v233
    %v948 = vunpack.c.l.b16 %v234
    %v949 = vunpack.c.h.b16 %v234
    %v950 = vunpack.c.l.b16 %v235
    %v951 = vunpack.c.h.b16 %v235
    %v952 = vunpack.c.l.b16 %v236
    %v953 = vunpack.c.h.b16 %v236
    %v954 = vunpack.c.l.b16 %v237
    %v955 = vunpack.c.h.b16 %v237
    %v956 = vunpack.c.l.b16 %v238
    %v957 = vunpack.c.l.b16 %v239
    %v958 = vunpack.c.h.b16 %v239
    %v959 = vunpack.c.l.b16 %v240
    %v960 = vunpack.c.h.b16 %v240
    %v961 = vunpack.c.l.b16 %v241
    %v962 = vunpack.c.h.b16 %v241
    %v963 = vunpack.c.l.b16 %v242
    %v964 = vunpack.c.h.b16 %v242
    %v965 = vunpack.c.l.b16 %v243
    %v966 = vunpack.c.l.b16 %v244
    %v967 = vunpack.c.h.b16 %v244
    %v968 = vunpack.c.l.b16 %v245
    %v969 = vunpack.c.h.b16 %v245
    %v970 = vunpack.c.l.b16 %v246
    %v971 = vunpack.c.h.b16 %v246
    %v972 = vunpack.c.l.b16 %v247
    %v973 = vunpack.c.h.b16 %v247
    %v974 = vunpack.c.l.b16 %v248
    %v975 = vunpack.c.l.b16 %v249
    %v976 = vunpack.c.h.b16 %v249
    %v977 = vunpack.c.l.b16 %v250
    %v978 = vunpack.c.h.b16 %v250
    %v979 = vunpack.c.l.b16 %v251
    %v980 = vunpack.c.h.b16 %v251
    %v981 = vunpack.c.l.b16 %v252
    %v982 = vunpack.c.h.b16 %v252
    %v983 = vunpack.c.l.b16 %v253
    %v984 = vunpack.c.l.b16 %v254
    %v985 = vunpack.c.h.b16 %v254
    %v986 = vunpack.c.l.b16 %v255
    %v987 = vunpack.c.h.b16 %v255
    %v988 = vunpack.c.l.b16 %v256
    %v989 = vunpack.c.h.b16 %v256
    %v990 = vunpack.c.l.b16 %v257
    %v991 = vunpack.c.h.b16 %v257
    %v992 = vunpack.c.l.b16 %v258
    %v993 = vunpack.c.l.b16 %v259
    %v994 = vunpack.c.h.b16 %v259
    %v995 = vunpack.c.l.b16 %v260
    %v996 = vunpack.c.h.b16 %v260
    %v997 = vunpack.c.l.b16 %v261
    %v998 = vunpack.c.h.b16 %v261
    %v999 = vunpack.c.l.b16 %v262
    %v1000 = vunpack.c.h.b16 %v262
    %v1001 = vunpack.c.l.b16 %v263
    %v1002 = vunpack.c.l.b16 %v264
    %v1003 = vunpack.c.h.b16 %v264
    %v1004 = vunpack.c.l.b16 %v265
    %v1005 = vunpack.c.h.b16 %v265
    %v1006 = vunpack.c.l.b16 %v266
    %v1007 = vunpack.c.h.b16 %v266
    %v1008 = vunpack.c.l.b16 %v267
    %v1009 = vunpack.c.h.b16 %v267
    %v1010 = vunpack.c.l.b16 %v268
    %v1011 = vunpack.c.l.b16 %v269
    %v1012 = vunpack.c.h.b16 %v269
    %v1013 = vunpack.c.l.b16 %v270
    %v1014 = vunpack.c.h.b16 %v270
    %v1015 = vunpack.c.l.b16 %v271
    %v1016 = vunpack.c.h.b16 %v271
    %v1017 = vunpack.c.l.b16 %v272
    %v1018 = vunpack.c.h.b16 %v272
    %v1019 = vunpack.c.l.b16 %v273
    %v1020 = vunpack.c.l.b16 %v274
    %v1021 = vunpack.c.h.b16 %v274
    %v1022 = vunpack.c.l.b16 %v275
    %v1023 = vunpack.c.h.b16 %v275
    %v1024 = vunpack.c.l.b16 %v276
    %v1025 = vunpack.c.h.b16 %v276
    %v1026 = vunpack.c.l.b16 %v277
    %v1027 = vunpack.c.h.b16 %v277
    %v1028 = vunpack.c.l.b16 %v278
    %v1029 = vunpack.c.l.b16 %v279
    %v1030 = vunpack.c.h.b16 %v279
    %v1031 = vunpack.c.l.b16 %v280
    %v1032 = vunpack.c.h.b16 %v280
    %v1033 = vunpack.c.l.b16 %v281
    %v1034 = vunpack.c.h.b16 %v281
    %v1035 = vunpack.c.l.b16 %v282
    %v1036 = vunpack.c.h.b16 %v282
    %v1037 = vunpack.c.l.b16 %v283
    %v1038 = vunpack.c.l.b16 %v284
    %v1039 = vunpack.c.h.b16 %v284
    %v1040 = vunpack.c.l.b16 %v285
    %v1041 = vunpack.c.h.b16 %v285
    %v1042 = vunpack.c.l.b16 %v286
    %v1043 = vunpack.c.h.b16 %v286
    %v1044 = vunpack.c.l.b16 %v287
    %v1045 = vunpack.c.h.b16 %v287
    %v1046 = vunpack.c.l.b16 %v288
    %v1047 = vunpack.c.l.b16 %v289
    %v1048 = vunpack.c.h.b16 %v289
    %v1049 = vunpack.c.l.b16 %v290
    %v1050 = vunpack.c.h.b16 %v290
    %v1051 = vunpack.c.l.b16 %v291
    %v1052 = vunpack.c.h.b16 %v291
    %v1053 = vunpack.c.l.b16 %v292
    %v1054 = vunpack.c.h.b16 %v292
    %v1055 = vunpack.c.l.b16 %v293
    %v1056 = vpack.c.b16 %v615, %v606
    %v1057 = vpack.c.b16 %v616, %v607
    %v1058 = vpack.c.b16 %v617, %v608
    %v1059 = vpack.c.b16 %v618, %v609
    %v1060 = vpack.c.b16 %v619, %v610
    %v1061 = vpack.c.b16 %v620, %v611
    %v1062 = vpack.c.b16 %v621, %v612
    %v1063 = vpack.c.b16 %v622, %v613
    %v1064 = vpack.c.b16 %v623, %v614
    %v1065 = vpack.c.b16 %v633, %v624
    %v1066 = vpack.c.b16 %v634, %v625
    %v1067 = vpack.c.b16 %v635, %v626
    %v1068 = vpack.c.b16 %v636, %v627
    %v1069 = vpack.c.b16 %v637, %v628
    %v1070 = vpack.c.b16 %v638, %v629
    %v1071 = vpack.c.b16 %v639, %v630
    %v1072 = vpack.c.b16 %v640, %v631
    %v1073 = vpack.c.b16 %v641, %v632
    %v1074 = vpack.c.b16 %v651, %v642
    %v1075 = vpack.c.b16 %v652, %v643
    %v1076 = vpack.c.b16 %v653, %v644
    %v1077 = vpack.c.b16 %v654, %v645
    %v1078 = vpack.c.b16 %v655, %v646
    %v1079 = vpack.c.b16 %v656, %v647
    %v1080 = vpack.c.b16 %v657, %v648
    %v1081 = vpack.c.b16 %v658, %v649
    %v1082 = vpack.c.b16 %v659, %v650
    %v1083 = vpack.c.b16 %v669, %v660
    %v1084 = vpack.c.b16 %v670, %v661
    %v1085 = vpack.c.b16 %v671, %v662
    %v1086 = vpack.c.b16 %v672, %v663
    %v1087 = vpack.c.b16 %v673, %v664
    %v1088 = vpack.c.b16 %v674, %v665
    %v1089 = vpack.c.b16 %v675, %v666
    %v1090 = vpack.c.b16 %v676, %v667
    %v1091 = vpack.c.b16 %v677, %v668
    %v1092 = vpack.c.b16 %v687, %v678
    %v1093 = vpack.c.b16 %v688, %v679
    %v1094 = vpack.c.b16 %v689, %v680
    %v1095 = vpack.c.b16 %v690, %v681
    %v1096 = vpack.c.b16 %v691, %v682
    %v1097 = vpack.c.b16 %v692, %v683
    %v1098 = vpack.c.b16 %v693, %v684
    %v1099 = vpack.c.b16 %v694, %v685
    %v1100 = vpack.c.b16 %v695, %v686
    %v1101 = vpack.c.b16 %v705, %v696
    %v1102 = vpack.c.b16 %v706, %v697
    %v1103 = vpack.c.b16 %v707, %v698
    %v1104 = vpack.c.b16 %v708, %v699
    %v1105 = vpack.c.b16 %v709, %v700
    %v1106 = vpack.c.b16 %v710, %v701
    %v1107 = vpack.c.b16 %v711, %v702
    %v1108 = vpack.c.b16 %v712, %v703
    %v1109 = vpack.c.b16 %v713, %v704
    %v1110 = vpack.c.b16 %v723, %v714
    %v1111 = vpack.c.b16 %v724, %v715
    %v1112 = vpack.c.b16 %v725, %v716
    %v1113 = vpack.c.b16 %v726, %v717
    %v1114 = vpack.c.b16 %v727, %v718
    %v1115 = vpack.c.b16 %v728, %v719
    %v1116 = vpack.c.b16 %v729, %v720
    %v1117 = vpack.c.b16 %v730, %v721
    %v1118 = vpack.c.b16 %v731, %v722
    %v1119 = vpack.c.b16 %v741, %v732
    %v1120 = vpack.c.b16 %v742, %v733
    %v1121 = vpack.c.b16 %v743, %v734
    %v1122 = vpack.c.b16 %v744, %v735
    %v1123 = vpack.c.b16 %v745, %v736
    %v1124 = vpack.c.b16 %v746, %v737
    %v1125 = vpack.c.b16 %v747, %v738
    %v1126 = vpack.c.b16 %v748, %v739
    %v1127 = vpack.c.b16 %v749, %v740
    %v1128 = vpack.c.b16 %v759, %v750
    %v1129 = vpack.c.b16 %v760, %v751
    %v1130 = vpack.c.b16 %v761, %v752
    %v1131 = vpack.c.b16 %v762, %v753
    %v1132 = vpack.c.b16 %v763, %v754
    %v1133 = vpack.c.b16 %v764, %v755
    %v1134 = vpack.c.b16 %v765, %v756
    %v1135 = vpack.c.b16 %v766, %v757
    %v1136 = vpack.c.b16 %v767, %v758
    %v1137 = vpack.c.b16 %v777, %v768
    %v1138 = vpack.c.b16 %v778, %v769
    %v1139 = vpack.c.b16 %v779, %v770
    %v1140 = vpack.c.b16 %v780, %v771
    %v1141 = vpack.c.b16 %v781, %v772
    %v1142 = vpack.c.b16 %v782, %v773
    %v1143 = vpack.c.b16 %v783, %v774
    %v1144 = vpack.c.b16 %v784, %v775
    %v1145 = vpack.c.b16 %v785, %v776
    %v1146 = vpack.c.b16 %v795, %v786
    %v1147 = vpack.c.b16 %v796, %v787
    %v1148 = vpack.c.b16 %v797, %v788
    %v1149 = vpack.c.b16 %v798, %v789
    %v1150 = vpack.c.b16 %v799, %v790
    %v1151 = vpack.c.b16 %v800, %v791
    %v1152 = vpack.c.b16 %v801, %v792
    %v1153 = vpack.c.b16 %v802, %v793
    %v1154 = vpack.c.b16 %v803, %v794
    %v1155 = vpack.c.b16 %v813, %v804
    %v1156 = vpack.c.b16 %v814, %v805
    %v1157 = vpack.c.b16 %v815, %v806
    %v1158 = vpack.c.b16 %v816, %v807
    %v1159 = vpack.c.b16 %v817, %v808
    %v1160 = vpack.c.b16 %v818, %v809
    %v1161 = vpack.c.b16 %v819, %v810
    %v1162 = vpack.c.b16 %v820, %v811
    %v1163 = vpack.c.b16 %v821, %v812
    %v1164 = vpack.c.b16 %v831, %v822
    %v1165 = vpack.c.b16 %v832, %v823
    %v1166 = vpack.c.b16 %v833, %v824
    %v1167 = vpack.c.b16 %v834, %v825
    %v1168 = vpack.c.b16 %v835, %v826
    %v1169 = vpack.c.b16 %v836, %v827
    %v1170 = vpack.c.b16 %v837, %v828
    %v1171 = vpack.c.b16 %v838, %v829
    %v1172 = vpack.c.b16 %v839, %v830
    %v1173 = vpack.c.b16 %v849, %v840
    %v1174 = vpack.c.b16 %v850, %v841
    %v1175 = vpack.c.b16 %v851, %v842
    %v1176 = vpack.c.b16 %v852, %v843
    %v1177 = vpack.c.b16 %v853, %v844
    %v1178 = vpack.c.b16 %v854, %v845
    %v1179 = vpack.c.b16 %v855, %v846
    %v1180 = vpack.c.b16 %v856, %v847
    %v1181 = vpack.c.b16 %v857, %v848
    %v1182 = vpack.c.b16 %v867, %v858
    %v1183 = vpack.c.b16 %v868, %v859
    %v1184 = vpack.c.b16 %v869, %v860
    %v1185 = vpack.c.b16 %v870, %v861
    %v1186 = vpack.c.b16 %v871, %v862
    %v1187 = vpack.c.b16 %v872, %v863
    %v1188 = vpack.c.b16 %v873, %v864
    %v1189 = vpack.c.b16 %v874, %v865
    %v1190 = vpack.c.b16 %v875, %v866
    %v1191 = vpack.c.b16 %v885, %v876
    %v1192 = vpack.c.b16 %v886, %v877
    %v1193 = vpack.c.b16 %v887, %v878
    %v1194 = vpack.c.b16 %v888, %v879
    %v1195 = vpack.c.b16 %v889, %v880
    %v1196 = vpack.c.b16 %v890, %v881
    %v1197 = vpack.c.b16 %v891, %v882
    %v1198 = vpack.c.b16 %v892, %v883
    %v1199 = vpack.c.b16 %v893, %v884
    %v1200 = vpack.c.b16 %v903, %v894
    %v1201 = vpack.c.b16 %v904, %v895
    %v1202 = vpack.c.b16 %v905, %v896
    %v1203 = vpack.c.b16 %v906, %v897
    %v1204 = vpack.c.b16 %v907, %v898
    %v1205 = vpack.c.b16 %v908, %v899
    %v1206 = vpack.c.b16 %v909, %v900
    %v1207 = vpack.c.b16 %v910, %v901
    %v1208 = vpack.c.b16 %v911, %v902
    %v1209 = vpack.c.b16 %v921, %v912
    %v1210 = vpack.c.b16 %v922, %v913
    %v1211 = vpack.c.b16 %v923, %v914
    %v1212 = vpack.c.b16 %v924, %v915
    %v1213 = vpack.c.b16 %v925, %v916
    %v1214 = vpack.c.b16 %v926, %v917
    %v1215 = vpack.c.b16 %v927, %v918
    %v1216 = vpack.c.b16 %v928, %v919
    %v1217 = vpack.c.b16 %v929, %v920
    %v1218 = vpack.c.b16 %v939, %v930
    %v1219 = vpack.c.b16 %v940, %v931
    %v1220 = vpack.c.b16 %v941, %v932
    %v1221 = vpack.c.b16 %v942, %v933
    %v1222 = vpack.c.b16 %v943, %v934
    %v1223 = vpack.c.b16 %v944, %v935
    %v1224 = vpack.c.b16 %v945, %v936
    %v1225 = vpack.c.b16 %v946, %v937
    %v1226 = vpack.c.b16 %v947, %v938
    %v1227 = vpack.c.b16 %v957, %v948
    %v1228 = vpack.c.b16 %v958, %v949
    %v1229 = vpack.c.b16 %v959, %v950
    %v1230 = vpack.c.b16 %v960, %v951
    %v1231 = vpack.c.b16 %v961, %v952
    %v1232 = vpack.c.b16 %v962, %v953
    %v1233 = vpack.c.b16 %v963, %v954
    %v1234 = vpack.c.b16 %v964, %v955
    %v1235 = vpack.c.b16 %v965, %v956
    %v1236 = vpack.c.b16 %v975, %v966
    %v1237 = vpack.c.b16 %v976, %v967
    %v1238 = vpack.c.b16 %v977, %v968
    %v1239 = vpack.c.b16 %v978, %v969
    %v1240 = vpack.c.b16 %v979, %v970
    %v1241 = vpack.c.b16 %v980, %v971
    %v1242 = vpack.c.b16 %v981, %v972
    %v1243 = vpack.c.b16 %v982, %v973
    %v1244 = vpack.c.b16 %v983, %v974
    %v1245 = vpack.c.b16 %v993, %v984
    %v1246 = vpack.c.b16 %v994, %v985
    %v1247 = vpack.c.b16 %v995, %v986
    %v1248 = vpack.c.b16 %v996, %v987
    %v1249 = vpack.c.b16 %v997, %v988
    %v1250 = vpack.c.b16 %v998, %v989
    %v1251 = vpack.c.b16 %v999, %v990
    %v1252 = vpack.c.b16 %v1000, %v991
    %v1253 = vpack.c.b16 %v1001, %v992
    %v1254 = vpack.c.b16 %v1011, %v1002
    %v1255 = vpack.c.b16 %v1012, %v1003
    %v1256 = vpack.c.b16 %v1013, %v1004
    %v1257 = vpack.c.b16 %v1014, %v1005
    %v1258 = vpack.c.b16 %v1015, %v1006
    %v1259 = vpack.c.b16 %v1016, %v1007
    %v1260 = vpack.c.b16 %v1017, %v1008
    %v1261 = vpack.c.b16 %v1018, %v1009
    %v1262 = vpack.c.b16 %v1019, %v1010
    %v1263 = vpack.c.b16 %v1029, %v1020
    %v1264 = vpack.c.b16 %v1030, %v1021
    %v1265 = vpack.c.b16 %v1031, %v1022
    %v1266 = vpack.c.b16 %v1032, %v1023
    %v1267 = vpack.c.b16 %v1033, %v1024
    %v1268 = vpack.c.b16 %v1034, %v1025
    %v1269 = vpack.c.b16 %v1035, %v1026
    %v1270 = vpack.c.b16 %v1036, %v1027
    %v1271 = vpack.c.b16 %v1037, %v1028
    %v1272 = vpack.c.b16 %v1047, %v1038
    %v1273 = vpack.c.b16 %v1048, %v1039
    %v1274 = vpack.c.b16 %v1049, %v1040
    %v1275 = vpack.c.b16 %v1050, %v1041
    %v1276 = vpack.c.b16 %v1051, %v1042
    %v1277 = vpack.c.b16 %v1052, %v1043
    %v1278 = vpack.c.b16 %v1053, %v1044
    %v1279 = vpack.c.b16 %v1054, %v1045
    %v1280 = vpack.c.b16 %v1055, %v1046
    %vm1506 = vcmask 130048
    %v1508 = vsel %vm1506, %v352, 0
    %1510 = vmatprep.subr.bf16.mxu0 %v1057
    %1511 = vmatpush1.bf16.msra.mxu0 %v1056
    %1512 = vmatprep.subr.bf16.mxu0 %v1066
    %1513 = vmatpush1.bf16.msra.mxu0 %v1065
    %1514 = vmatprep.subr.bf16.mxu0 %v1075
    %1515 = vmatpush1.bf16.msra.mxu0 %v1074
    %1516 = vmatprep.subr.bf16.mxu0 %v1084
    %1517 = vmatpush1.bf16.msra.mxu0 %v1083
    %1518 = vmatprep.subr.bf16.mxu0 %v1093
    %1519 = vmatpush1.bf16.msra.mxu0 %v1092
    %1520 = vmatprep.subr.bf16.mxu0 %v1102
    %1521 = vmatpush1.bf16.msra.mxu0 %v1101
    %1522 = vmatprep.subr.bf16.mxu0 %v1111
    %1523 = vmatpush1.bf16.msra.mxu0 %v1110
    %1524 = vmatprep.subr.bf16.mxu0 %v1120
    %1525 = vmatpush1.bf16.msra.mxu0 %v1119
    %1526 = vmatprep.subr.bf16.mxu0 %v1129
    %1527 = vmatpush1.bf16.msra.mxu0 %v1128
    %1528 = vmatprep.subr.bf16.mxu0 %v1138
    %1529 = vmatpush1.bf16.msra.mxu0 %v1137
    %1530 = vmatprep.subr.bf16.mxu0 %v1147
    %1531 = vmatpush1.bf16.msra.mxu0 %v1146
    %1532 = vmatprep.subr.bf16.mxu0 %v1156
    %1533 = vmatpush1.bf16.msra.mxu0 %v1155
    %1534 = vmatprep.subr.bf16.mxu0 %v1165
    %1535 = vmatpush1.bf16.msra.mxu0 %v1164
    %1536 = vmatprep.subr.bf16.mxu0 %v1174
    %1537 = vmatpush1.bf16.msra.mxu0 %v1173
    %1538 = vmatprep.subr.bf16.mxu0 %v1183
    %1539 = vmatpush1.bf16.msra.mxu0 %v1182
    %1540 = vmatprep.subr.bf16.mxu0 %v1192
    %1541 = vmatpush1.bf16.msra.mxu0 %v1191
    %1542 = vmatprep.mubr.bf16.mxu0 %v350
    %1543 = vmatmul.mubr.bf16.gmra.mrb[0].mxu0 %v349
    %v1544 = vpop.f32.mrb[0].mxu0
    %v1545 = vadd.f32 %v301, %v1544
    %v1546 = vpop.f32.mrb[0].mxu0
    %v1547 = vadd.f32 %v305, %v1546
    %v1548 = vpop.f32.mrb[0].mxu0
    %v1549 = vpop.f32.mrb[0].mxu0
    %1550 = vdwg.mxu0
    %1551 = vmatprep.subr.bf16.mxu0 %v1201
    %1552 = vmatpush1.bf16.msra.mxu0 %v1200
    %1553 = vmatprep.subr.bf16.mxu0 %v1210
    %1554 = vmatpush1.bf16.msra.mxu0 %v1209
    %1555 = vmatprep.subr.bf16.mxu0 %v1219
    %1556 = vmatpush1.bf16.msra.mxu0 %v1218
    %1557 = vmatprep.subr.bf16.mxu0 %v1228
    %1558 = vmatpush1.bf16.msra.mxu0 %v1227
    %1559 = vmatprep.subr.bf16.mxu0 %v1237
    %1560 = vmatpush1.bf16.msra.mxu0 %v1236
    %1561 = vmatprep.subr.bf16.mxu0 %v1246
    %1562 = vmatpush1.bf16.msra.mxu0 %v1245
    %1563 = vmatprep.subr.bf16.mxu0 %v1255
    %1564 = vmatpush1.bf16.msra.mxu0 %v1254
    %1565 = vmatprep.subr.bf16.mxu0 %v1264
    %1566 = vmatpush1.bf16.msra.mxu0 %v1263
    %1567 = vmatprep.subr.bf16.mxu0 %v1273
    %1568 = vmatpush1.bf16.msra.mxu0 %v1272
    %1569 = vmatprep.subr.bf16.mxu0 0
    %1570 = vmatpush1.bf16.msra.mxu0 0
    %1571 = vmatprep.subr.bf16.mxu0 0
    %1572 = vmatpush1.bf16.msra.mxu0 0
    %1573 = vmatprep.subr.bf16.mxu0 0
    %1574 = vmatpush1.bf16.msra.mxu0 0
    %1575 = vmatprep.subr.bf16.mxu0 0
    %1576 = vmatpush1.bf16.msra.mxu0 0
    %1577 = vmatprep.subr.bf16.mxu0 0
    %1578 = vmatpush1.bf16.msra.mxu0 0
    %1579 = vmatprep.subr.bf16.mxu0 0
    %1580 = vmatpush1.bf16.msra.mxu0 0
    %1581 = vmatprep.subr.bf16.mxu0 0
    %1582 = vmatpush1.bf16.msra.mxu0 0
    %1583 = vmatprep.mubr.bf16.mxu0 %v1508
    %1584 = vmatmul.mubr.bf16.gmra.mrb[0].mxu0 %v351
    %v1585 = vpop.f32.mrb[0].mxu0
    %v1586 = vadd.f32 %v1545, %v1585
    %v1587 = vpop.f32.mrb[0].mxu0
    %v1588 = vadd.f32 %v1547, %v1587
    %v1589 = vpop.f32.mrb[0].mxu0
    %v1590 = vpop.f32.mrb[0].mxu0
    %1591 = vdwg.mxu0
    %1592 = vmatprep.subr.bf16.mxu0 %v1059
    %1593 = vmatpush1.bf16.msra.mxu0 %v1058
    %1594 = vmatprep.subr.bf16.mxu0 %v1068
    %1595 = vmatpush1.bf16.msra.mxu0 %v1067
    %1596 = vmatprep.subr.bf16.mxu0 %v1077
    %1597 = vmatpush1.bf16.msra.mxu0 %v1076
    %1598 = vmatprep.subr.bf16.mxu0 %v1086
    %1599 = vmatpush1.bf16.msra.mxu0 %v1085
    %1600 = vmatprep.subr.bf16.mxu0 %v1095
    %1601 = vmatpush1.bf16.msra.mxu0 %v1094
    %1602 = vmatprep.subr.bf16.mxu0 %v1104
    %1603 = vmatpush1.bf16.msra.mxu0 %v1103
    %1604 = vmatprep.subr.bf16.mxu0 %v1113
    %1605 = vmatpush1.bf16.msra.mxu0 %v1112
    %1606 = vmatprep.subr.bf16.mxu0 %v1122
    %1607 = vmatpush1.bf16.msra.mxu0 %v1121
    %1608 = vmatprep.subr.bf16.mxu0 %v1131
    %1609 = vmatpush1.bf16.msra.mxu0 %v1130
    %1610 = vmatprep.subr.bf16.mxu0 %v1140
    %1611 = vmatpush1.bf16.msra.mxu0 %v1139
    %1612 = vmatprep.subr.bf16.mxu0 %v1149
    %1613 = vmatpush1.bf16.msra.mxu0 %v1148
    %1614 = vmatprep.subr.bf16.mxu0 %v1158
    %1615 = vmatpush1.bf16.msra.mxu0 %v1157
    %1616 = vmatprep.subr.bf16.mxu0 %v1167
    %1617 = vmatpush1.bf16.msra.mxu0 %v1166
    %1618 = vmatprep.subr.bf16.mxu0 %v1176
    %1619 = vmatpush1.bf16.msra.mxu0 %v1175
    %1620 = vmatprep.subr.bf16.mxu0 %v1185
    %1621 = vmatpush1.bf16.msra.mxu0 %v1184
    %1622 = vmatprep.subr.bf16.mxu0 %v1194
    %1623 = vmatpush1.bf16.msra.mxu0 %v1193
    %1624 = vmatprep.mubr.bf16.mxu0 %v350
    %1625 = vmatmul.mubr.bf16.gmra.mrb[0].mxu0 %v349
    %v1626 = vpop.f32.mrb[0].mxu0
    %v1627 = vadd.f32 %v309, %v1626
    %v1628 = vpop.f32.mrb[0].mxu0
    %v1629 = vadd.f32 %v313, %v1628
    %v1630 = vpop.f32.mrb[0].mxu0
    %v1631 = vpop.f32.mrb[0].mxu0
    %1632 = vdwg.mxu0
    %1633 = vmatprep.subr.bf16.mxu0 %v1203
    %1634 = vmatpush1.bf16.msra.mxu0 %v1202
    %1635 = vmatprep.subr.bf16.mxu0 %v1212
    %1636 = vmatpush1.bf16.msra.mxu0 %v1211
    %1637 = vmatprep.subr.bf16.mxu0 %v1221
    %1638 = vmatpush1.bf16.msra.mxu0 %v1220
    %1639 = vmatprep.subr.bf16.mxu0 %v1230
    %1640 = vmatpush1.bf16.msra.mxu0 %v1229
    %1641 = vmatprep.subr.bf16.mxu0 %v1239
    %1642 = vmatpush1.bf16.msra.mxu0 %v1238
    %1643 = vmatprep.subr.bf16.mxu0 %v1248
    %1644 = vmatpush1.bf16.msra.mxu0 %v1247
    %1645 = vmatprep.subr.bf16.mxu0 %v1257
    %1646 = vmatpush1.bf16.msra.mxu0 %v1256
    %1647 = vmatprep.subr.bf16.mxu0 %v1266
    %1648 = vmatpush1.bf16.msra.mxu0 %v1265
    %1649 = vmatprep.subr.bf16.mxu0 %v1275
    %1650 = vmatpush1.bf16.msra.mxu0 %v1274
    %1651 = vmatprep.subr.bf16.mxu0 0
    %1652 = vmatpush1.bf16.msra.mxu0 0
    %1653 = vmatprep.subr.bf16.mxu0 0
    %1654 = vmatpush1.bf16.msra.mxu0 0
    %1655 = vmatprep.subr.bf16.mxu0 0
    %1656 = vmatpush1.bf16.msra.mxu0 0
    %1657 = vmatprep.subr.bf16.mxu0 0
    %1658 = vmatpush1.bf16.msra.mxu0 0
    %1659 = vmatprep.subr.bf16.mxu0 0
    %1660 = vmatpush1.bf16.msra.mxu0 0
    %1661 = vmatprep.subr.bf16.mxu0 0
    %1662 = vmatpush1.bf16.msra.mxu0 0
    %1663 = vmatprep.subr.bf16.mxu0 0
    %1664 = vmatpush1.bf16.msra.mxu0 0
    %1665 = vmatprep.mubr.bf16.mxu0 %v1508
    %1666 = vmatmul.mubr.bf16.gmra.mrb[0].mxu0 %v351
    %v1667 = vpop.f32.mrb[0].mxu0
    %v1668 = vadd.f32 %v1627, %v1667
    %v1669 = vpop.f32.mrb[0].mxu0
    %v1670 = vadd.f32 %v1629, %v1669
    %v1671 = vpop.f32.mrb[0].mxu0
    %v1672 = vpop.f32.mrb[0].mxu0
    %1673 = vdwg.mxu0
    %1674 = vmatprep.subr.bf16.mxu0 %v1061
    %1675 = vmatpush1.bf16.msra.mxu0 %v1060
    %1676 = vmatprep.subr.bf16.mxu0 %v1070
    %1677 = vmatpush1.bf16.msra.mxu0 %v1069
    %1678 = vmatprep.subr.bf16.mxu0 %v1079
    %1679 = vmatpush1.bf16.msra.mxu0 %v1078
    %1680 = vmatprep.subr.bf16.mxu0 %v1088
    %1681 = vmatpush1.bf16.msra.mxu0 %v1087
    %1682 = vmatprep.subr.bf16.mxu0 %v1097
    %1683 = vmatpush1.bf16.msra.mxu0 %v1096
    %1684 = vmatprep.subr.bf16.mxu0 %v1106
    %1685 = vmatpush1.bf16.msra.mxu0 %v1105
    %1686 = vmatprep.subr.bf16.mxu0 %v1115
    %1687 = vmatpush1.bf16.msra.mxu0 %v1114
    %1688 = vmatprep.subr.bf16.mxu0 %v1124
    %1689 = vmatpush1.bf16.msra.mxu0 %v1123
    %1690 = vmatprep.subr.bf16.mxu0 %v1133
    %1691 = vmatpush1.bf16.msra.mxu0 %v1132
    %1692 = vmatprep.subr.bf16.mxu0 %v1142
    %1693 = vmatpush1.bf16.msra.mxu0 %v1141
    %1694 = vmatprep.subr.bf16.mxu0 %v1151
    %1695 = vmatpush1.bf16.msra.mxu0 %v1150
    %1696 = vmatprep.subr.bf16.mxu0 %v1160
    %1697 = vmatpush1.bf16.msra.mxu0 %v1159
    %1698 = vmatprep.subr.bf16.mxu0 %v1169
    %1699 = vmatpush1.bf16.msra.mxu0 %v1168
    %1700 = vmatprep.subr.bf16.mxu0 %v1178
    %1701 = vmatpush1.bf16.msra.mxu0 %v1177
    %1702 = vmatprep.subr.bf16.mxu0 %v1187
    %1703 = vmatpush1.bf16.msra.mxu0 %v1186
    %1704 = vmatprep.subr.bf16.mxu0 %v1196
    %1705 = vmatpush1.bf16.msra.mxu0 %v1195
    %1706 = vmatprep.mubr.bf16.mxu0 %v350
    %1707 = vmatmul.mubr.bf16.gmra.mrb[0].mxu0 %v349
    %v1708 = vpop.f32.mrb[0].mxu0
    %v1709 = vadd.f32 %v317, %v1708
    %v1710 = vpop.f32.mrb[0].mxu0
    %v1711 = vadd.f32 %v321, %v1710
    %v1712 = vpop.f32.mrb[0].mxu0
    %v1713 = vpop.f32.mrb[0].mxu0
    %1714 = vdwg.mxu0
    %1715 = vmatprep.subr.bf16.mxu0 %v1205
    %1716 = vmatpush1.bf16.msra.mxu0 %v1204
    %1717 = vmatprep.subr.bf16.mxu0 %v1214
    %1718 = vmatpush1.bf16.msra.mxu0 %v1213
    %1719 = vmatprep.subr.bf16.mxu0 %v1223
    %1720 = vmatpush1.bf16.msra.mxu0 %v1222
    %1721 = vmatprep.subr.bf16.mxu0 %v1232
    %1722 = vmatpush1.bf16.msra.mxu0 %v1231
    %1723 = vmatprep.subr.bf16.mxu0 %v1241
    %1724 = vmatpush1.bf16.msra.mxu0 %v1240
    %1725 = vmatprep.subr.bf16.mxu0 %v1250
    %1726 = vmatpush1.bf16.msra.mxu0 %v1249
    %1727 = vmatprep.subr.bf16.mxu0 %v1259
    %1728 = vmatpush1.bf16.msra.mxu0 %v1258
    %1729 = vmatprep.subr.bf16.mxu0 %v1268
    %1730 = vmatpush1.bf16.msra.mxu0 %v1267
    %1731 = vmatprep.subr.bf16.mxu0 %v1277
    %1732 = vmatpush1.bf16.msra.mxu0 %v1276
    %1733 = vmatprep.subr.bf16.mxu0 0
    %1734 = vmatpush1.bf16.msra.mxu0 0
    %1735 = vmatprep.subr.bf16.mxu0 0
    %1736 = vmatpush1.bf16.msra.mxu0 0
    %1737 = vmatprep.subr.bf16.mxu0 0
    %1738 = vmatpush1.bf16.msra.mxu0 0
    %1739 = vmatprep.subr.bf16.mxu0 0
    %1740 = vmatpush1.bf16.msra.mxu0 0
    %1741 = vmatprep.subr.bf16.mxu0 0
    %1742 = vmatpush1.bf16.msra.mxu0 0
    %1743 = vmatprep.subr.bf16.mxu0 0
    %1744 = vmatpush1.bf16.msra.mxu0 0
    %1745 = vmatprep.subr.bf16.mxu0 0
    %1746 = vmatpush1.bf16.msra.mxu0 0
    %1747 = vmatprep.mubr.bf16.mxu0 %v1508
    %1748 = vmatmul.mubr.bf16.gmra.mrb[0].mxu0 %v351
    %v1749 = vpop.f32.mrb[0].mxu0
    %v1750 = vadd.f32 %v1709, %v1749
    %v1751 = vpop.f32.mrb[0].mxu0
    %v1752 = vadd.f32 %v1711, %v1751
    %v1753 = vpop.f32.mrb[0].mxu0
    %v1754 = vpop.f32.mrb[0].mxu0
    %1755 = vdwg.mxu0
    %1756 = vmatprep.subr.bf16.mxu0 %v1063
    %1757 = vmatpush1.bf16.msra.mxu0 %v1062
    %1758 = vmatprep.subr.bf16.mxu0 %v1072
    %1759 = vmatpush1.bf16.msra.mxu0 %v1071
    %1760 = vmatprep.subr.bf16.mxu0 %v1081
    %1761 = vmatpush1.bf16.msra.mxu0 %v1080
    %1762 = vmatprep.subr.bf16.mxu0 %v1090
    %1763 = vmatpush1.bf16.msra.mxu0 %v1089
    %1764 = vmatprep.subr.bf16.mxu0 %v1099
    %1765 = vmatpush1.bf16.msra.mxu0 %v1098
    %1766 = vmatprep.subr.bf16.mxu0 %v1108
    %1767 = vmatpush1.bf16.msra.mxu0 %v1107
    %1768 = vmatprep.subr.bf16.mxu0 %v1117
    %1769 = vmatpush1.bf16.msra.mxu0 %v1116
    %1770 = vmatprep.subr.bf16.mxu0 %v1126
    %1771 = vmatpush1.bf16.msra.mxu0 %v1125
    %1772 = vmatprep.subr.bf16.mxu0 %v1135
    %1773 = vmatpush1.bf16.msra.mxu0 %v1134
    %1774 = vmatprep.subr.bf16.mxu0 %v1144
    %1775 = vmatpush1.bf16.msra.mxu0 %v1143
    %1776 = vmatprep.subr.bf16.mxu0 %v1153
    %1777 = vmatpush1.bf16.msra.mxu0 %v1152
    %1778 = vmatprep.subr.bf16.mxu0 %v1162
    %1779 = vmatpush1.bf16.msra.mxu0 %v1161
    %1780 = vmatprep.subr.bf16.mxu0 %v1171
    %1781 = vmatpush1.bf16.msra.mxu0 %v1170
    %1782 = vmatprep.subr.bf16.mxu0 %v1180
    %1783 = vmatpush1.bf16.msra.mxu0 %v1179
    %1784 = vmatprep.subr.bf16.mxu0 %v1189
    %1785 = vmatpush1.bf16.msra.mxu0 %v1188
    %1786 = vmatprep.subr.bf16.mxu0 %v1198
    %1787 = vmatpush1.bf16.msra.mxu0 %v1197
    %1788 = vmatprep.mubr.bf16.mxu0 %v350
    %1789 = vmatmul.mubr.bf16.gmra.mrb[0].mxu0 %v349
    %v1790 = vpop.f32.mrb[0].mxu0
    %v1791 = vadd.f32 %v325, %v1790
    %v1792 = vpop.f32.mrb[0].mxu0
    %v1793 = vadd.f32 %v329, %v1792
    %v1794 = vpop.f32.mrb[0].mxu0
    %v1795 = vpop.f32.mrb[0].mxu0
    %1796 = vdwg.mxu0
    %1797 = vmatprep.subr.bf16.mxu0 %v1207
    %1798 = vmatpush1.bf16.msra.mxu0 %v1206
    %1799 = vmatprep.subr.bf16.mxu0 %v1216
    %1800 = vmatpush1.bf16.msra.mxu0 %v1215
    %1801 = vmatprep.subr.bf16.mxu0 %v1225
    %1802 = vmatpush1.bf16.msra.mxu0 %v1224
    %1803 = vmatprep.subr.bf16.mxu0 %v1234
    %1804 = vmatpush1.bf16.msra.mxu0 %v1233
    %1805 = vmatprep.subr.bf16.mxu0 %v1243
    %1806 = vmatpush1.bf16.msra.mxu0 %v1242
    %1807 = vmatprep.subr.bf16.mxu0 %v1252
    %1808 = vmatpush1.bf16.msra.mxu0 %v1251
    %1809 = vmatprep.subr.bf16.mxu0 %v1261
    %1810 = vmatpush1.bf16.msra.mxu0 %v1260
    %1811 = vmatprep.subr.bf16.mxu0 %v1270
    %1812 = vmatpush1.bf16.msra.mxu0 %v1269
    %1813 = vmatprep.subr.bf16.mxu0 %v1279
    %1814 = vmatpush1.bf16.msra.mxu0 %v1278
    %1815 = vmatprep.subr.bf16.mxu0 0
    %1816 = vmatpush1.bf16.msra.mxu0 0
    %1817 = vmatprep.subr.bf16.mxu0 0
    %1818 = vmatpush1.bf16.msra.mxu0 0
    %1819 = vmatprep.subr.bf16.mxu0 0
    %1820 = vmatpush1.bf16.msra.mxu0 0
    %1821 = vmatprep.subr.bf16.mxu0 0
    %1822 = vmatpush1.bf16.msra.mxu0 0
    %1823 = vmatprep.subr.bf16.mxu0 0
    %1824 = vmatpush1.bf16.msra.mxu0 0
    %1825 = vmatprep.subr.bf16.mxu0 0
    %1826 = vmatpush1.bf16.msra.mxu0 0
    %1827 = vmatprep.subr.bf16.mxu0 0
    %1828 = vmatpush1.bf16.msra.mxu0 0
    %1829 = vmatprep.mubr.bf16.mxu0 %v1508
    %1830 = vmatmul.mubr.bf16.gmra.mrb[0].mxu0 %v351
    %v1831 = vpop.f32.mrb[0].mxu0
    %v1832 = vadd.f32 %v1791, %v1831
    %v1833 = vpop.f32.mrb[0].mxu0
    %v1834 = vadd.f32 %v1793, %v1833
    %v1835 = vpop.f32.mrb[0].mxu0
    %v1836 = vpop.f32.mrb[0].mxu0
    %1837 = vdwg.mxu0
    %1838 = vmatprep.subr.bf16.mxu0 0
    %1839 = vmatpush1.bf16.msra.mxu0 %v1064
    %1840 = vmatprep.subr.bf16.mxu0 0
    %1841 = vmatpush1.bf16.msra.mxu0 %v1073
    %1842 = vmatprep.subr.bf16.mxu0 0
    %1843 = vmatpush1.bf16.msra.mxu0 %v1082
    %1844 = vmatprep.subr.bf16.mxu0 0
    %1845 = vmatpush1.bf16.msra.mxu0 %v1091
    %1846 = vmatprep.subr.bf16.mxu0 0
    %1847 = vmatpush1.bf16.msra.mxu0 %v1100
    %1848 = vmatprep.subr.bf16.mxu0 0
    %1849 = vmatpush1.bf16.msra.mxu0 %v1109
    %1850 = vmatprep.subr.bf16.mxu0 0
    %1851 = vmatpush1.bf16.msra.mxu0 %v1118
    %1852 = vmatprep.subr.bf16.mxu0 0
    %1853 = vmatpush1.bf16.msra.mxu0 %v1127
    %1854 = vmatprep.subr.bf16.mxu0 0
    %1855 = vmatpush1.bf16.msra.mxu0 %v1136
    %1856 = vmatprep.subr.bf16.mxu0 0
    %1857 = vmatpush1.bf16.msra.mxu0 %v1145
    %1858 = vmatprep.subr.bf16.mxu0 0
    %1859 = vmatpush1.bf16.msra.mxu0 %v1154
    %1860 = vmatprep.subr.bf16.mxu0 0
    %1861 = vmatpush1.bf16.msra.mxu0 %v1163
    %1862 = vmatprep.subr.bf16.mxu0 0
    %1863 = vmatpush1.bf16.msra.mxu0 %v1172
    %1864 = vmatprep.subr.bf16.mxu0 0
    %1865 = vmatpush1.bf16.msra.mxu0 %v1181
    %1866 = vmatprep.subr.bf16.mxu0 0
    %1867 = vmatpush1.bf16.msra.mxu0 %v1190
    %1868 = vmatprep.subr.bf16.mxu0 0
    %1869 = vmatpush1.bf16.msra.mxu0 %v1199
    %1870 = vmatprep.mubr.bf16.mxu0 %v350
    %1871 = vmatmul.mubr.bf16.gmra.mrb[0].mxu0 %v349
    %v1872 = vpop.f32.mrb[0].mxu0
    %v1873 = vadd.f32 %v333, %v1872
    %v1874 = vpop.f32.mrb[0].mxu0
    %v1875 = vpop.f32.mrb[0].mxu0
    %v1876 = vpop.f32.mrb[0].mxu0
    %1877 = vdwg.mxu0
    %1878 = vmatprep.subr.bf16.mxu0 0
    %1879 = vmatpush1.bf16.msra.mxu0 %v1208
    %1880 = vmatprep.subr.bf16.mxu0 0
    %1881 = vmatpush1.bf16.msra.mxu0 %v1217
    %1882 = vmatprep.subr.bf16.mxu0 0
    %1883 = vmatpush1.bf16.msra.mxu0 %v1226
    %1884 = vmatprep.subr.bf16.mxu0 0
    %1885 = vmatpush1.bf16.msra.mxu0 %v1235
    %1886 = vmatprep.subr.bf16.mxu0 0
    %1887 = vmatpush1.bf16.msra.mxu0 %v1244
    %1888 = vmatprep.subr.bf16.mxu0 0
    %1889 = vmatpush1.bf16.msra.mxu0 %v1253
    %1890 = vmatprep.subr.bf16.mxu0 0
    %1891 = vmatpush1.bf16.msra.mxu0 %v1262
    %1892 = vmatprep.subr.bf16.mxu0 0
    %1893 = vmatpush1.bf16.msra.mxu0 %v1271
    %1894 = vmatprep.subr.bf16.mxu0 0
    %1895 = vmatpush1.bf16.msra.mxu0 %v1280
    %1896 = vmatprep.subr.bf16.mxu0 0
    %1897 = vmatpush1.bf16.msra.mxu0 0
    %1898 = vmatprep.subr.bf16.mxu0 0
    %1899 = vmatpush1.bf16.msra.mxu0 0
    %1900 = vmatprep.subr.bf16.mxu0 0
    %1901 = vmatpush1.bf16.msra.mxu0 0
    %1902 = vmatprep.subr.bf16.mxu0 0
    %1903 = vmatpush1.bf16.msra.mxu0 0
    %1904 = vmatprep.subr.bf16.mxu0 0
    %1905 = vmatpush1.bf16.msra.mxu0 0
    %1906 = vmatprep.subr.bf16.mxu0 0
    %1907 = vmatpush1.bf16.msra.mxu0 0
    %1908 = vmatprep.subr.bf16.mxu0 0
    %1909 = vmatpush1.bf16.msra.mxu0 0
    %1910 = vmatprep.mubr.bf16.mxu0 %v1508
    %1911 = vmatmul.mubr.bf16.gmra.mrb[0].mxu0 %v351
    %v1912 = vpop.f32.mrb[0].mxu0
    %v1913 = vadd.f32 %v1873, %v1912
    %v1914 = vpop.f32.mrb[0].mxu0
    %v1915 = vpop.f32.mrb[0].mxu0
    %v1916 = vpop.f32.mrb[0].mxu0
    %1917 = vdwg.mxu0
    %v1918 = vmax.f32 %v1586, 0.0
    %v1919 = vmax.f32 %v1588, 0.0
    %v1920 = vmax.f32 %v1668, 0.0
    %v1921 = vmax.f32 %v1670, 0.0
    %v1922 = vmax.f32 %v1750, 0.0
    %v1923 = vmax.f32 %v1752, 0.0
    %v1924 = vmax.f32 %v1832, 0.0
    %v1925 = vmax.f32 %v1834, 0.0
    %v1926 = vmax.f32 %v1913, 0.0
    %v1927 = vpack.c.bf16 %v1918, %v1918
    %v1928 = vpack.c.bf16 %v1919, %v1919
    %v1929 = vpack.c.bf16 %v1920, %v1920
    %v1930 = vpack.c.bf16 %v1921, %v1921
    %v1931 = vpack.c.bf16 %v1922, %v1922
    %v1932 = vpack.c.bf16 %v1923, %v1923
    %v1933 = vpack.c.bf16 %v1924, %v1924
    %v1934 = vpack.c.bf16 %v1925, %v1925
    %v1935 = vpack.c.bf16 %v1926, %v1926
    %v1936 = vld [vmem:[%s3] sm:$0xf]
    %v1937 = vld [vmem:[%s3 + $0x4] sm:$0xf]
    %v1938 = vld [vmem:[%s3 + $0x8] sm:$0xf]
    %v1939 = vld [vmem:[%s3 + $0xc] sm:$0xf]
    %v1940 = vld [vmem:[%s3 + $0x10] sm:$0xf]
    %v1941 = vld [vmem:[%s3 + $0x14] sm:$0xf]
    %v1942 = vld [vmem:[%s3 + $0x18] sm:$0xf]
    %v1943 = vld [vmem:[%s3 + $0x1c] sm:$0xf]
    %v1944 = vld [vmem:[%s3 + $0x20] sm:$0xf]
    %v1945 = vld [vmem:[%s3 + $0x24] sm:$0xf]
    %v1946 = vld [vmem:[%s3 + $0x28] sm:$0xf]
    %v1947 = vld [vmem:[%s3 + $0x2c] sm:$0xf]
    %v1948 = vld [vmem:[%s3 + $0x30] sm:$0xf]
    %v1949 = vld [vmem:[%s3 + $0x34] sm:$0xf]
    %v1950 = vld [vmem:[%s3 + $0x38] sm:$0xf]
    %v1951 = vld [vmem:[%s3 + $0x3c] sm:$0xf]
    %v1952 = vld [vmem:[%s3 + $0x40] sm:$0xf]
    %v1953 = vld [vmem:[%s3 + $0x44] sm:$0xf]
    %v1954 = vld [vmem:[%s3 + $0x48] sm:$0xf]
    %v1955 = vld [vmem:[%s3 + $0x4c] sm:$0xf]
    %v1956 = vld [vmem:[%s3 + $0x50] sm:$0xf]
    %v1957 = vld [vmem:[%s3 + $0x54] sm:$0xf]
    %v1958 = vld [vmem:[%s3 + $0x58] sm:$0xf]
    %v1959 = vld [vmem:[%s3 + $0x5c] sm:$0xf]
    %v1960 = vld [vmem:[%s3 + $0x60] sm:$0xf]
    %v1961 = vld [vmem:[%s3 + $0x64] sm:$0xf]
    %v1962 = vld [vmem:[%s3 + $0x68] sm:$0xf]
    %v1963 = vld [vmem:[%s3 + $0x6c] sm:$0xf]
    %v1964 = vld [vmem:[%s3 + $0x70] sm:$0xf]
    %v1965 = vld [vmem:[%s3 + $0x74] sm:$0xf]
    %v1966 = vld [vmem:[%s3 + $0x78] sm:$0xf]
    %v1967 = vld [vmem:[%s3 + $0x7c] sm:$0xf]
    %v1968 = vld [vmem:[%s3 + $0x80] sm:$0xf]
    %v1969 = vld [vmem:[%s3 + $0x84] sm:$0xf]
    %v1970 = vld [vmem:[%s3 + $0x88] sm:$0xf]
    %v1971 = vld [vmem:[%s3 + $0x8c] sm:$0xf]
    %v1972 = vld [vmem:[%s3 + $0x90] sm:$0xf]
    %v1973 = vld [vmem:[%s3 + $0x94] sm:$0xf]
    %v1974 = vld [vmem:[%s3 + $0x98] sm:$0xf]
    %v1975 = vld [vmem:[%s3 + $0x9c] sm:$0xf]
    %v1976 = vld [vmem:[%s3 + $0xa0] sm:$0xf]
    %v1977 = vld [vmem:[%s3 + $0xa4] sm:$0xf]
    %v1978 = vld [vmem:[%s3 + $0xa8] sm:$0xf]
    %v1979 = vld [vmem:[%s3 + $0xac] sm:$0xf]
    %v1980 = vld [vmem:[%s3 + $0xb0] sm:$0xf]
    %v1981 = vld [vmem:[%s3 + $0xb4] sm:$0xf]
    %v1982 = vld [vmem:[%s3 + $0xb8] sm:$0xf]
    %v1983 = vld [vmem:[%s3 + $0xbc] sm:$0xf]
    %v1984 = vld [vmem:[%s3 + $0xc0] sm:$0xf]
    %v1985 = vld [vmem:[%s3 + $0xc4] sm:$0xf]
    %v1986 = vld [vmem:[%s3 + $0xc8] sm:$0xf]
    %v1987 = vld [vmem:[%s3 + $0xcc] sm:$0xf]
    %v1988 = vld [vmem:[%s3 + $0xd0] sm:$0xf]
    %v1989 = vld [vmem:[%s3 + $0xd4] sm:$0xf]
    %v1990 = vld [vmem:[%s3 + $0xd8] sm:$0xf]
    %v1991 = vld [vmem:[%s3 + $0xdc] sm:$0xf]
    %v1992 = vld [vmem:[%s3 + $0xe0] sm:$0xf]
    %v1993 = vld [vmem:[%s3 + $0xe4] sm:$0xf]
    %v1994 = vld [vmem:[%s3 + $0xe8] sm:$0xf]
    %v1995 = vld [vmem:[%s3 + $0xec] sm:$0xf]
    %v1996 = vld [vmem:[%s3 + $0xf0] sm:$0xf]
    %v1997 = vld [vmem:[%s3 + $0xf4] sm:$0xf]
    %v1998 = vld [vmem:[%s3 + $0xf8] sm:$0xf]
    %v1999 = vld [vmem:[%s3 + $0xfc] sm:$0xf]
    %v2000 = vld [vmem:[%s3 + $0x100] sm:$0xf]
    %v2001 = vld [vmem:[%s3 + $0x104] sm:$0xf]
    %v2002 = vld [vmem:[%s3 + $0x108] sm:$0xf]
    %v2003 = vld [vmem:[%s3 + $0x10c] sm:$0xf]
    %v2004 = vld [vmem:[%s3 + $0x110] sm:$0xf]
    %v2005 = vld [vmem:[%s3 + $0x114] sm:$0xf]
    %v2006 = vld [vmem:[%s3 + $0x118] sm:$0xf]
    %v2007 = vld [vmem:[%s3 + $0x11c] sm:$0xf]
    %v2008 = vld [vmem:[%s3 + $0x120] sm:$0xf]
    %v2009 = vld [vmem:[%s3 + $0x124] sm:$0xf]
    %v2010 = vld [vmem:[%s3 + $0x128] sm:$0xf]
    %v2011 = vld [vmem:[%s3 + $0x12c] sm:$0xf]
    %v2012 = vld [vmem:[%s3 + $0x130] sm:$0xf]
    %v2013 = vld [vmem:[%s3 + $0x134] sm:$0xf]
    %v2014 = vld [vmem:[%s3 + $0x138] sm:$0xf]
    %v2015 = vld [vmem:[%s3 + $0x13c] sm:$0xf]
    %v2016 = vld [vmem:[%s3 + $0x140] sm:$0xf]
    %v2017 = vld [vmem:[%s3 + $0x144] sm:$0xf]
    %v2018 = vld [vmem:[%s3 + $0x148] sm:$0xf]
    %v2019 = vld [vmem:[%s3 + $0x14c] sm:$0xf]
    %v2020 = vld [vmem:[%s3 + $0x150] sm:$0xf]
    %v2021 = vld [vmem:[%s3 + $0x154] sm:$0xf]
    %v2022 = vld [vmem:[%s3 + $0x158] sm:$0xf]
    %v2023 = vld [vmem:[%s3 + $0x15c] sm:$0xf]
    %v2024 = vld [vmem:[%s3 + $0x160] sm:$0xf]
    %v2025 = vld [vmem:[%s3 + $0x164] sm:$0xf]
    %v2026 = vld [vmem:[%s3 + $0x168] sm:$0xf]
    %v2027 = vld [vmem:[%s3 + $0x16c] sm:$0xf]
    %v2028 = vld [vmem:[%s3 + $0x170] sm:$0xf]
    %v2029 = vld [vmem:[%s3 + $0x174] sm:$0xf]
    %v2030 = vld [vmem:[%s3 + $0x178] sm:$0xf]
    %v2031 = vld [vmem:[%s3 + $0x17c] sm:$0xf]
    %v2032 = vld [vmem:[%s3 + $0x180] sm:$0xf]
    %v2033 = vld [vmem:[%s3 + $0x184] sm:$0xf]
    %v2034 = vld [vmem:[%s3 + $0x188] sm:$0xf]
    %v2035 = vld [vmem:[%s3 + $0x18c] sm:$0xf]
    %v2036 = vld [vmem:[%s3 + $0x190] sm:$0xf]
    %v2037 = vld [vmem:[%s3 + $0x194] sm:$0xf]
    %v2038 = vld [vmem:[%s3 + $0x198] sm:$0xf]
    %v2039 = vld [vmem:[%s3 + $0x19c] sm:$0xf]
    %v2040 = vld [vmem:[%s3 + $0x1a0] sm:$0xf]
    %v2041 = vld [vmem:[%s3 + $0x1a4] sm:$0xf]
    %v2042 = vld [vmem:[%s3 + $0x1a8] sm:$0xf]
    %v2043 = vld [vmem:[%s3 + $0x1ac] sm:$0xf]
    %v2044 = vld [vmem:[%s3 + $0x1b0] sm:$0xf]
    %v2045 = vld [vmem:[%s3 + $0x1b4] sm:$0xf]
    %v2046 = vld [vmem:[%s3 + $0x1b8] sm:$0xf]
    %v2047 = vld [vmem:[%s3 + $0x1bc] sm:$0xf]
    %v2048 = vld [vmem:[%s3 + $0x1c0] sm:$0xf]
    %v2049 = vld [vmem:[%s3 + $0x1c4] sm:$0xf]
    %v2050 = vld [vmem:[%s3 + $0x1c8] sm:$0xf]
    %v2051 = vld [vmem:[%s3 + $0x1cc] sm:$0xf]
    %v2052 = vld [vmem:[%s3 + $0x1d0] sm:$0xf]
    %v2053 = vld [vmem:[%s3 + $0x1d4] sm:$0xf]
    %v2054 = vld [vmem:[%s3 + $0x1d8] sm:$0xf]
    %v2055 = vld [vmem:[%s3 + $0x1dc] sm:$0xf]
    %v2056 = vld [vmem:[%s3 + $0x1e0] sm:$0xf]
    %v2057 = vld [vmem:[%s3 + $0x1e4] sm:$0xf]
    %v2058 = vld [vmem:[%s3 + $0x1e8] sm:$0xf]
    %v2059 = vld [vmem:[%s3 + $0x1ec] sm:$0xf]
    %v2060 = vld [vmem:[%s3 + $0x1f0] sm:$0xf]
    %v2061 = vld [vmem:[%s3 + $0x1f4] sm:$0xf]
    %v2062 = vld [vmem:[%s3 + $0x1f8] sm:$0xf]
    %v2063 = vld [vmem:[%s3 + $0x1fc] sm:$0xf]
    %v2064 = vld [vmem:[%s3 + $0x200] sm:$0xf]
    %v2065 = vld [vmem:[%s3 + $0x204] sm:$0xf]
    %v2066 = vld [vmem:[%s3 + $0x208] sm:$0xf]
    %v2067 = vld [vmem:[%s3 + $0x20c] sm:$0xf]
    %v2068 = vld [vmem:[%s3 + $0x210] sm:$0xf]
    %v2069 = vld [vmem:[%s3 + $0x214] sm:$0xf]
    %v2070 = vld [vmem:[%s3 + $0x218] sm:$0xf]
    %v2071 = vld [vmem:[%s3 + $0x21c] sm:$0xf]
    %v2072 = vld [vmem:[%s3 + $0x220] sm:$0xf]
    %v2073 = vld [vmem:[%s3 + $0x224] sm:$0xf]
    %v2074 = vld [vmem:[%s3 + $0x228] sm:$0xf]
    %v2075 = vld [vmem:[%s3 + $0x22c] sm:$0xf]
    %v2076 = vld [vmem:[%s3 + $0x230] sm:$0xf]
    %v2077 = vld [vmem:[%s3 + $0x234] sm:$0xf]
    %v2078 = vld [vmem:[%s3 + $0x238] sm:$0xf]
    %v2079 = vld [vmem:[%s3 + $0x23c] sm:$0xf]
    %v2080 = vld [vmem:[%s4] sm:$0x1]
    %v2082 = vlaneseq
    %v2083 = vshrl.u32 %v2082, 7
    %v2084 = vsub.s32 0, %v2083
    %v2085 = vrot.slane %v2080, %v2084
    %v2231 = vunpack.c.l.b16 %v1936
    %v2232 = vunpack.c.l.b16 %v1937
    %v2233 = vunpack.c.l.b16 %v1938
    %v2234 = vunpack.c.l.b16 %v1939
    %v2235 = vunpack.c.l.b16 %v1940
    %v2236 = vunpack.c.l.b16 %v1941
    %v2237 = vunpack.c.l.b16 %v1942
    %v2238 = vunpack.c.l.b16 %v1943
    %v2239 = vunpack.c.l.b16 %v1944
    %v2240 = vunpack.c.l.b16 %v1945
    %v2241 = vunpack.c.l.b16 %v1946
    %v2242 = vunpack.c.l.b16 %v1947
    %v2243 = vunpack.c.l.b16 %v1948
    %v2244 = vunpack.c.l.b16 %v1949
    %v2245 = vunpack.c.l.b16 %v1950
    %v2246 = vunpack.c.l.b16 %v1951
    %v2247 = vunpack.c.l.b16 %v1952
    %v2248 = vunpack.c.l.b16 %v1953
    %v2249 = vunpack.c.l.b16 %v1954
    %v2250 = vunpack.c.l.b16 %v1955
    %v2251 = vunpack.c.l.b16 %v1956
    %v2252 = vunpack.c.l.b16 %v1957
    %v2253 = vunpack.c.l.b16 %v1958
    %v2254 = vunpack.c.l.b16 %v1959
    %v2255 = vunpack.c.l.b16 %v1960
    %v2256 = vunpack.c.l.b16 %v1961
    %v2257 = vunpack.c.l.b16 %v1962
    %v2258 = vunpack.c.l.b16 %v1963
    %v2259 = vunpack.c.l.b16 %v1964
    %v2260 = vunpack.c.l.b16 %v1965
    %v2261 = vunpack.c.l.b16 %v1966
    %v2262 = vunpack.c.l.b16 %v1967
    %v2263 = vunpack.c.l.b16 %v1968
    %v2264 = vunpack.c.l.b16 %v1969
    %v2265 = vunpack.c.l.b16 %v1970
    %v2266 = vunpack.c.l.b16 %v1971
    %v2267 = vunpack.c.l.b16 %v1972
    %v2268 = vunpack.c.l.b16 %v1973
    %v2269 = vunpack.c.l.b16 %v1974
    %v2270 = vunpack.c.l.b16 %v1975
    %v2271 = vunpack.c.l.b16 %v1976
    %v2272 = vunpack.c.l.b16 %v1977
    %v2273 = vunpack.c.l.b16 %v1978
    %v2274 = vunpack.c.l.b16 %v1979
    %v2275 = vunpack.c.l.b16 %v1980
    %v2276 = vunpack.c.l.b16 %v1981
    %v2277 = vunpack.c.l.b16 %v1982
    %v2278 = vunpack.c.l.b16 %v1983
    %v2279 = vunpack.c.l.b16 %v1984
    %v2280 = vunpack.c.l.b16 %v1985
    %v2281 = vunpack.c.l.b16 %v1986
    %v2282 = vunpack.c.l.b16 %v1987
    %v2283 = vunpack.c.l.b16 %v1988
    %v2284 = vunpack.c.l.b16 %v1989
    %v2285 = vunpack.c.l.b16 %v1990
    %v2286 = vunpack.c.l.b16 %v1991
    %v2287 = vunpack.c.l.b16 %v1992
    %v2288 = vunpack.c.l.b16 %v1993
    %v2289 = vunpack.c.l.b16 %v1994
    %v2290 = vunpack.c.l.b16 %v1995
    %v2291 = vunpack.c.l.b16 %v1996
    %v2292 = vunpack.c.l.b16 %v1997
    %v2293 = vunpack.c.l.b16 %v1998
    %v2294 = vunpack.c.l.b16 %v1999
    %v2295 = vunpack.c.l.b16 %v2000
    %v2296 = vunpack.c.l.b16 %v2001
    %v2297 = vunpack.c.l.b16 %v2002
    %v2298 = vunpack.c.l.b16 %v2003
    %v2299 = vunpack.c.l.b16 %v2004
    %v2300 = vunpack.c.l.b16 %v2005
    %v2301 = vunpack.c.l.b16 %v2006
    %v2302 = vunpack.c.l.b16 %v2007
    %v2303 = vunpack.c.l.b16 %v2008
    %v2304 = vunpack.c.l.b16 %v2009
    %v2305 = vunpack.c.l.b16 %v2010
    %v2306 = vunpack.c.l.b16 %v2011
    %v2307 = vunpack.c.l.b16 %v2012
    %v2308 = vunpack.c.l.b16 %v2013
    %v2309 = vunpack.c.l.b16 %v2014
    %v2310 = vunpack.c.l.b16 %v2015
    %v2311 = vunpack.c.l.b16 %v2016
    %v2312 = vunpack.c.l.b16 %v2017
    %v2313 = vunpack.c.l.b16 %v2018
    %v2314 = vunpack.c.l.b16 %v2019
    %v2315 = vunpack.c.l.b16 %v2020
    %v2316 = vunpack.c.l.b16 %v2021
    %v2317 = vunpack.c.l.b16 %v2022
    %v2318 = vunpack.c.l.b16 %v2023
    %v2319 = vunpack.c.l.b16 %v2024
    %v2320 = vunpack.c.l.b16 %v2025
    %v2321 = vunpack.c.l.b16 %v2026
    %v2322 = vunpack.c.l.b16 %v2027
    %v2323 = vunpack.c.l.b16 %v2028
    %v2324 = vunpack.c.l.b16 %v2029
    %v2325 = vunpack.c.l.b16 %v2030
    %v2326 = vunpack.c.l.b16 %v2031
    %v2327 = vunpack.c.l.b16 %v2032
    %v2328 = vunpack.c.l.b16 %v2033
    %v2329 = vunpack.c.l.b16 %v2034
    %v2330 = vunpack.c.l.b16 %v2035
    %v2331 = vunpack.c.l.b16 %v2036
    %v2332 = vunpack.c.l.b16 %v2037
    %v2333 = vunpack.c.l.b16 %v2038
    %v2334 = vunpack.c.l.b16 %v2039
    %v2335 = vunpack.c.l.b16 %v2040
    %v2336 = vunpack.c.l.b16 %v2041
    %v2337 = vunpack.c.l.b16 %v2042
    %v2338 = vunpack.c.l.b16 %v2043
    %v2339 = vunpack.c.l.b16 %v2044
    %v2340 = vunpack.c.l.b16 %v2045
    %v2341 = vunpack.c.l.b16 %v2046
    %v2342 = vunpack.c.l.b16 %v2047
    %v2343 = vunpack.c.l.b16 %v2048
    %v2344 = vunpack.c.l.b16 %v2049
    %v2345 = vunpack.c.l.b16 %v2050
    %v2346 = vunpack.c.l.b16 %v2051
    %v2347 = vunpack.c.l.b16 %v2052
    %v2348 = vunpack.c.l.b16 %v2053
    %v2349 = vunpack.c.l.b16 %v2054
    %v2350 = vunpack.c.l.b16 %v2055
    %v2351 = vunpack.c.l.b16 %v2056
    %v2352 = vunpack.c.l.b16 %v2057
    %v2353 = vunpack.c.l.b16 %v2058
    %v2354 = vunpack.c.l.b16 %v2059
    %v2355 = vunpack.c.l.b16 %v2060
    %v2356 = vunpack.c.l.b16 %v2061
    %v2357 = vunpack.c.l.b16 %v2062
    %v2358 = vunpack.c.l.b16 %v2063
    %v2359 = vunpack.c.l.b16 %v2064
    %v2360 = vunpack.c.l.b16 %v2065
    %v2361 = vunpack.c.l.b16 %v2066
    %v2362 = vunpack.c.l.b16 %v2067
    %v2363 = vunpack.c.l.b16 %v2068
    %v2364 = vunpack.c.l.b16 %v2069
    %v2365 = vunpack.c.l.b16 %v2070
    %v2366 = vunpack.c.l.b16 %v2071
    %v2367 = vunpack.c.l.b16 %v2072
    %v2368 = vunpack.c.l.b16 %v2073
    %v2369 = vunpack.c.l.b16 %v2074
    %v2370 = vunpack.c.l.b16 %v2075
    %v2371 = vunpack.c.l.b16 %v2076
    %v2372 = vunpack.c.l.b16 %v2077
    %v2373 = vunpack.c.l.b16 %v2078
    %v2374 = vunpack.c.l.b16 %v2079
    %v2375 = vpack.c.b16 %v2232, %v2231
    %v2376 = vpack.c.b16 %v2234, %v2233
    %v2377 = vpack.c.b16 %v2236, %v2235
    %v2378 = vpack.c.b16 %v2238, %v2237
    %v2379 = vpack.c.b16 %v2240, %v2239
    %v2380 = vpack.c.b16 %v2242, %v2241
    %v2381 = vpack.c.b16 %v2244, %v2243
    %v2382 = vpack.c.b16 %v2246, %v2245
    %v2383 = vpack.c.b16 %v2248, %v2247
    %v2384 = vpack.c.b16 %v2250, %v2249
    %v2385 = vpack.c.b16 %v2252, %v2251
    %v2386 = vpack.c.b16 %v2254, %v2253
    %v2387 = vpack.c.b16 %v2256, %v2255
    %v2388 = vpack.c.b16 %v2258, %v2257
    %v2389 = vpack.c.b16 %v2260, %v2259
    %v2390 = vpack.c.b16 %v2262, %v2261
    %v2391 = vpack.c.b16 %v2264, %v2263
    %v2392 = vpack.c.b16 %v2266, %v2265
    %v2393 = vpack.c.b16 %v2268, %v2267
    %v2394 = vpack.c.b16 %v2270, %v2269
    %v2395 = vpack.c.b16 %v2272, %v2271
    %v2396 = vpack.c.b16 %v2274, %v2273
    %v2397 = vpack.c.b16 %v2276, %v2275
    %v2398 = vpack.c.b16 %v2278, %v2277
    %v2399 = vpack.c.b16 %v2280, %v2279
    %v2400 = vpack.c.b16 %v2282, %v2281
    %v2401 = vpack.c.b16 %v2284, %v2283
    %v2402 = vpack.c.b16 %v2286, %v2285
    %v2403 = vpack.c.b16 %v2288, %v2287
    %v2404 = vpack.c.b16 %v2290, %v2289
    %v2405 = vpack.c.b16 %v2292, %v2291
    %v2406 = vpack.c.b16 %v2294, %v2293
    %v2407 = vpack.c.b16 %v2296, %v2295
    %v2408 = vpack.c.b16 %v2298, %v2297
    %v2409 = vpack.c.b16 %v2300, %v2299
    %v2410 = vpack.c.b16 %v2302, %v2301
    %v2411 = vpack.c.b16 %v2304, %v2303
    %v2412 = vpack.c.b16 %v2306, %v2305
    %v2413 = vpack.c.b16 %v2308, %v2307
    %v2414 = vpack.c.b16 %v2310, %v2309
    %v2415 = vpack.c.b16 %v2312, %v2311
    %v2416 = vpack.c.b16 %v2314, %v2313
    %v2417 = vpack.c.b16 %v2316, %v2315
    %v2418 = vpack.c.b16 %v2318, %v2317
    %v2419 = vpack.c.b16 %v2320, %v2319
    %v2420 = vpack.c.b16 %v2322, %v2321
    %v2421 = vpack.c.b16 %v2324, %v2323
    %v2422 = vpack.c.b16 %v2326, %v2325
    %v2423 = vpack.c.b16 %v2328, %v2327
    %v2424 = vpack.c.b16 %v2330, %v2329
    %v2425 = vpack.c.b16 %v2332, %v2331
    %v2426 = vpack.c.b16 %v2334, %v2333
    %v2427 = vpack.c.b16 %v2336, %v2335
    %v2428 = vpack.c.b16 %v2338, %v2337
    %v2429 = vpack.c.b16 %v2340, %v2339
    %v2430 = vpack.c.b16 %v2342, %v2341
    %v2431 = vpack.c.b16 %v2344, %v2343
    %v2432 = vpack.c.b16 %v2346, %v2345
    %v2433 = vpack.c.b16 %v2348, %v2347
    %v2434 = vpack.c.b16 %v2350, %v2349
    %v2435 = vpack.c.b16 %v2352, %v2351
    %v2436 = vpack.c.b16 %v2354, %v2353
    %v2437 = vpack.c.b16 %v2356, %v2355
    %v2438 = vpack.c.b16 %v2358, %v2357
    %v2439 = vpack.c.b16 %v2360, %v2359
    %v2440 = vpack.c.b16 %v2362, %v2361
    %v2441 = vpack.c.b16 %v2364, %v2363
    %v2442 = vpack.c.b16 %v2366, %v2365
    %v2443 = vpack.c.b16 %v2368, %v2367
    %v2444 = vpack.c.b16 %v2370, %v2369
    %v2445 = vpack.c.b16 %v2372, %v2371
    %v2446 = vpack.c.b16 %v2374, %v2373
    %2519 = vmatprep.subr.bf16.mxu0 0
    %2520 = vmatpush1.bf16.msra.mxu0 %v2375
    %2521 = vmatprep.subr.bf16.mxu0 0
    %2522 = vmatpush1.bf16.msra.mxu0 %v2376
    %2523 = vmatprep.subr.bf16.mxu0 0
    %2524 = vmatpush1.bf16.msra.mxu0 %v2377
    %2525 = vmatprep.subr.bf16.mxu0 0
    %2526 = vmatpush1.bf16.msra.mxu0 %v2378
    %2527 = vmatprep.subr.bf16.mxu0 0
    %2528 = vmatpush1.bf16.msra.mxu0 %v2379
    %2529 = vmatprep.subr.bf16.mxu0 0
    %2530 = vmatpush1.bf16.msra.mxu0 %v2380
    %2531 = vmatprep.subr.bf16.mxu0 0
    %2532 = vmatpush1.bf16.msra.mxu0 %v2381
    %2533 = vmatprep.subr.bf16.mxu0 0
    %2534 = vmatpush1.bf16.msra.mxu0 %v2382
    %2535 = vmatprep.subr.bf16.mxu0 0
    %2536 = vmatpush1.bf16.msra.mxu0 %v2383
    %2537 = vmatprep.subr.bf16.mxu0 0
    %2538 = vmatpush1.bf16.msra.mxu0 %v2384
    %2539 = vmatprep.subr.bf16.mxu0 0
    %2540 = vmatpush1.bf16.msra.mxu0 %v2385
    %2541 = vmatprep.subr.bf16.mxu0 0
    %2542 = vmatpush1.bf16.msra.mxu0 %v2386
    %2543 = vmatprep.subr.bf16.mxu0 0
    %2544 = vmatpush1.bf16.msra.mxu0 %v2387
    %2545 = vmatprep.subr.bf16.mxu0 0
    %2546 = vmatpush1.bf16.msra.mxu0 %v2388
    %2547 = vmatprep.subr.bf16.mxu0 0
    %2548 = vmatpush1.bf16.msra.mxu0 %v2389
    %2549 = vmatprep.subr.bf16.mxu0 0
    %2550 = vmatpush1.bf16.msra.mxu0 %v2390
    %2551 = vmatprep.mubr.bf16.mxu0 %v1928
    %2552 = vmatmul.mubr.bf16.gmra.mrb[0].mxu0 %v1927
    %v2553 = vpop.f32.mrb[0].mxu0
    %v2554 = vadd.f32 %v2085, %v2553
    %v2555 = vpop.f32.mrb[0].mxu0
    %v2556 = vpop.f32.mrb[0].mxu0
    %v2557 = vpop.f32.mrb[0].mxu0
    %2558 = vdwg.mxu0
    %2559 = vmatprep.subr.bf16.mxu0 0
    %2560 = vmatpush1.bf16.msra.mxu0 %v2391
    %2561 = vmatprep.subr.bf16.mxu0 0
    %2562 = vmatpush1.bf16.msra.mxu0 %v2392
    %2563 = vmatprep.subr.bf16.mxu0 0
    %2564 = vmatpush1.bf16.msra.mxu0 %v2393
    %2565 = vmatprep.subr.bf16.mxu0 0
    %2566 = vmatpush1.bf16.msra.mxu0 %v2394
    %2567 = vmatprep.subr.bf16.mxu0 0
    %2568 = vmatpush1.bf16.msra.mxu0 %v2395
    %2569 = vmatprep.subr.bf16.mxu0 0
    %2570 = vmatpush1.bf16.msra.mxu0 %v2396
    %2571 = vmatprep.subr.bf16.mxu0 0
    %2572 = vmatpush1.bf16.msra.mxu0 %v2397
    %2573 = vmatprep.subr.bf16.mxu0 0
    %2574 = vmatpush1.bf16.msra.mxu0 %v2398
    %2575 = vmatprep.subr.bf16.mxu0 0
    %2576 = vmatpush1.bf16.msra.mxu0 %v2399
    %2577 = vmatprep.subr.bf16.mxu0 0
    %2578 = vmatpush1.bf16.msra.mxu0 %v2400
    %2579 = vmatprep.subr.bf16.mxu0 0
    %2580 = vmatpush1.bf16.msra.mxu0 %v2401
    %2581 = vmatprep.subr.bf16.mxu0 0
    %2582 = vmatpush1.bf16.msra.mxu0 %v2402
    %2583 = vmatprep.subr.bf16.mxu0 0
    %2584 = vmatpush1.bf16.msra.mxu0 %v2403
    %2585 = vmatprep.subr.bf16.mxu0 0
    %2586 = vmatpush1.bf16.msra.mxu0 %v2404
    %2587 = vmatprep.subr.bf16.mxu0 0
    %2588 = vmatpush1.bf16.msra.mxu0 %v2405
    %2589 = vmatprep.subr.bf16.mxu0 0
    %2590 = vmatpush1.bf16.msra.mxu0 %v2406
    %2591 = vmatprep.mubr.bf16.mxu0 %v1930
    %2592 = vmatmul.mubr.bf16.gmra.mrb[0].mxu0 %v1929
    %v2593 = vpop.f32.mrb[0].mxu0
    %v2594 = vadd.f32 %v2554, %v2593
    %v2595 = vpop.f32.mrb[0].mxu0
    %v2596 = vpop.f32.mrb[0].mxu0
    %v2597 = vpop.f32.mrb[0].mxu0
    %2598 = vdwg.mxu0
    %2599 = vmatprep.subr.bf16.mxu0 0
    %2600 = vmatpush1.bf16.msra.mxu0 %v2407
    %2601 = vmatprep.subr.bf16.mxu0 0
    %2602 = vmatpush1.bf16.msra.mxu0 %v2408
    %2603 = vmatprep.subr.bf16.mxu0 0
    %2604 = vmatpush1.bf16.msra.mxu0 %v2409
    %2605 = vmatprep.subr.bf16.mxu0 0
    %2606 = vmatpush1.bf16.msra.mxu0 %v2410
    %2607 = vmatprep.subr.bf16.mxu0 0
    %2608 = vmatpush1.bf16.msra.mxu0 %v2411
    %2609 = vmatprep.subr.bf16.mxu0 0
    %2610 = vmatpush1.bf16.msra.mxu0 %v2412
    %2611 = vmatprep.subr.bf16.mxu0 0
    %2612 = vmatpush1.bf16.msra.mxu0 %v2413
    %2613 = vmatprep.subr.bf16.mxu0 0
    %2614 = vmatpush1.bf16.msra.mxu0 %v2414
    %2615 = vmatprep.subr.bf16.mxu0 0
    %2616 = vmatpush1.bf16.msra.mxu0 %v2415
    %2617 = vmatprep.subr.bf16.mxu0 0
    %2618 = vmatpush1.bf16.msra.mxu0 %v2416
    %2619 = vmatprep.subr.bf16.mxu0 0
    %2620 = vmatpush1.bf16.msra.mxu0 %v2417
    %2621 = vmatprep.subr.bf16.mxu0 0
    %2622 = vmatpush1.bf16.msra.mxu0 %v2418
    %2623 = vmatprep.subr.bf16.mxu0 0
    %2624 = vmatpush1.bf16.msra.mxu0 %v2419
    %2625 = vmatprep.subr.bf16.mxu0 0
    %2626 = vmatpush1.bf16.msra.mxu0 %v2420
    %2627 = vmatprep.subr.bf16.mxu0 0
    %2628 = vmatpush1.bf16.msra.mxu0 %v2421
    %2629 = vmatprep.subr.bf16.mxu0 0
    %2630 = vmatpush1.bf16.msra.mxu0 %v2422
    %2631 = vmatprep.mubr.bf16.mxu0 %v1932
    %2632 = vmatmul.mubr.bf16.gmra.mrb[0].mxu0 %v1931
    %v2633 = vpop.f32.mrb[0].mxu0
    %v2634 = vadd.f32 %v2594, %v2633
    %v2635 = vpop.f32.mrb[0].mxu0
    %v2636 = vpop.f32.mrb[0].mxu0
    %v2637 = vpop.f32.mrb[0].mxu0
    %2638 = vdwg.mxu0
    %2639 = vmatprep.subr.bf16.mxu0 0
    %2640 = vmatpush1.bf16.msra.mxu0 %v2423
    %2641 = vmatprep.subr.bf16.mxu0 0
    %2642 = vmatpush1.bf16.msra.mxu0 %v2424
    %2643 = vmatprep.subr.bf16.mxu0 0
    %2644 = vmatpush1.bf16.msra.mxu0 %v2425
    %2645 = vmatprep.subr.bf16.mxu0 0
    %2646 = vmatpush1.bf16.msra.mxu0 %v2426
    %2647 = vmatprep.subr.bf16.mxu0 0
    %2648 = vmatpush1.bf16.msra.mxu0 %v2427
    %2649 = vmatprep.subr.bf16.mxu0 0
    %2650 = vmatpush1.bf16.msra.mxu0 %v2428
    %2651 = vmatprep.subr.bf16.mxu0 0
    %2652 = vmatpush1.bf16.msra.mxu0 %v2429
    %2653 = vmatprep.subr.bf16.mxu0 0
    %2654 = vmatpush1.bf16.msra.mxu0 %v2430
    %2655 = vmatprep.subr.bf16.mxu0 0
    %2656 = vmatpush1.bf16.msra.mxu0 %v2431
    %2657 = vmatprep.subr.bf16.mxu0 0
    %2658 = vmatpush1.bf16.msra.mxu0 %v2432
    %2659 = vmatprep.subr.bf16.mxu0 0
    %2660 = vmatpush1.bf16.msra.mxu0 %v2433
    %2661 = vmatprep.subr.bf16.mxu0 0
    %2662 = vmatpush1.bf16.msra.mxu0 %v2434
    %2663 = vmatprep.subr.bf16.mxu0 0
    %2664 = vmatpush1.bf16.msra.mxu0 %v2435
    %2665 = vmatprep.subr.bf16.mxu0 0
    %2666 = vmatpush1.bf16.msra.mxu0 %v2436
    %2667 = vmatprep.subr.bf16.mxu0 0
    %2668 = vmatpush1.bf16.msra.mxu0 %v2437
    %2669 = vmatprep.subr.bf16.mxu0 0
    %2670 = vmatpush1.bf16.msra.mxu0 %v2438
    %2671 = vmatprep.mubr.bf16.mxu0 %v1934
    %2672 = vmatmul.mubr.bf16.gmra.mrb[0].mxu0 %v1933
    %v2673 = vpop.f32.mrb[0].mxu0
    %v2674 = vadd.f32 %v2634, %v2673
    %v2675 = vpop.f32.mrb[0].mxu0
    %v2676 = vpop.f32.mrb[0].mxu0
    %v2677 = vpop.f32.mrb[0].mxu0
    %2678 = vdwg.mxu0
    %2679 = vmatprep.subr.bf16.mxu0 0
    %2680 = vmatpush1.bf16.msra.mxu0 %v2439
    %2681 = vmatprep.subr.bf16.mxu0 0
    %2682 = vmatpush1.bf16.msra.mxu0 %v2440
    %2683 = vmatprep.subr.bf16.mxu0 0
    %2684 = vmatpush1.bf16.msra.mxu0 %v2441
    %2685 = vmatprep.subr.bf16.mxu0 0
    %2686 = vmatpush1.bf16.msra.mxu0 %v2442
    %2687 = vmatprep.subr.bf16.mxu0 0
    %2688 = vmatpush1.bf16.msra.mxu0 %v2443
    %2689 = vmatprep.subr.bf16.mxu0 0
    %2690 = vmatpush1.bf16.msra.mxu0 %v2444
    %2691 = vmatprep.subr.bf16.mxu0 0
    %2692 = vmatpush1.bf16.msra.mxu0 %v2445
    %2693 = vmatprep.subr.bf16.mxu0 0
    %2694 = vmatpush1.bf16.msra.mxu0 %v2446
    %2695 = vmatprep.subr.bf16.mxu0 0
    %2696 = vmatpush1.bf16.msra.mxu0 0
    %2697 = vmatprep.subr.bf16.mxu0 0
    %2698 = vmatpush1.bf16.msra.mxu0 0
    %2699 = vmatprep.subr.bf16.mxu0 0
    %2700 = vmatpush1.bf16.msra.mxu0 0
    %2701 = vmatprep.subr.bf16.mxu0 0
    %2702 = vmatpush1.bf16.msra.mxu0 0
    %2703 = vmatprep.subr.bf16.mxu0 0
    %2704 = vmatpush1.bf16.msra.mxu0 0
    %2705 = vmatprep.subr.bf16.mxu0 0
    %2706 = vmatpush1.bf16.msra.mxu0 0
    %2707 = vmatprep.subr.bf16.mxu0 0
    %2708 = vmatpush1.bf16.msra.mxu0 0
    %2709 = vmatprep.subr.bf16.mxu0 0
    %2710 = vmatpush1.bf16.msra.mxu0 0
    %2711 = vmatprep.mubr.bf16.mxu0 0
    %2712 = vmatmul.mubr.bf16.gmra.mrb[0].mxu0 %v1935
    %v2713 = vpop.f32.mrb[0].mxu0
    %v2714 = vadd.f32 %v2674, %v2713
    %v2715 = vpop.f32.mrb[0].mxu0
    %v2716 = vpop.f32.mrb[0].mxu0
    %v2717 = vpop.f32.mrb[0].mxu0
    %2718 = vdwg.mxu0
    %v2719 = vmul.f32 %v2714, 8.0
    %v2720 = vmul.f32 %v2719, %v2714
    %v2721 = vrsqrt.pop %v2720
    %v2722 = vmul.f32 %v2720, %v2721
    %vm2723 = vcmp.eq.f32.partialorder %v2720, inf
    %v2724 = vsel %vm2723, %v2720, %v2722
    %vm2725 = vcmp.eq.f32.partialorder %v2720, 0.0
    %v2726 = vand.u32 %v2720, 2147483648
    %v2727 = vsel %vm2725, %v2726, %v2724
    %v2728 = vmul.f32 %v2714, %v2727
    %v2729 = vadd.f32 %v2720, 1.0
    %v2730 = vrcp.pop %v2729
    %v2731 = vmul.f32 %v2728, %v2730
    %v2732 = vld [vmem:[%s5] sm:$0xff]
    %v2733 = vld [vmem:[%s5 + $0x8] sm:$0xff]
    %v2734 = vld [vmem:[%s5 + $0x10] sm:$0xff]
    %v2735 = vld [vmem:[%s5 + $0x18] sm:$0xff]
    %v2736 = vld [vmem:[%s5 + $0x20] sm:$0xff]
    %v2737 = vld [vmem:[%s5 + $0x28] sm:$0xff]
    %v2738 = vld [vmem:[%s5 + $0x30] sm:$0xff]
    %v2739 = vld [vmem:[%s5 + $0x38] sm:$0xff]
    %vm2740 = vcmask 261120
    %v2742 = vsel %vm2740, %v2731, 0
    %2744 = vmatprep.subr.mxu0 %v2733
    %2745 = vmatpush1.msra.mxu0 %v2732
    %2746 = vmatprep.subr.mxu0 %v2735
    %2747 = vmatpush1.msra.mxu0 %v2734
    %2748 = vmatprep.subr.mxu0 %v2737
    %2749 = vmatpush1.msra.mxu0 %v2736
    %2750 = vmatprep.subr.mxu0 %v2739
    %2751 = vmatpush1.msra.mxu0 %v2738
    %2752 = vmatprep.subr.mxu0 0.0
    %2753 = vmatpush1.msra.mxu0 0.0
    %2754 = vmatprep.subr.mxu0 0.0
    %2755 = vmatpush1.msra.mxu0 0.0
    %2756 = vmatprep.subr.mxu0 0.0
    %2757 = vmatpush1.msra.mxu0 0.0
    %2758 = vmatprep.subr.mxu0 0.0
    %2759 = vmatpush1.msra.mxu0 0.0
    %2760 = vmatprep.subr.mxu0 0.0
    %2761 = vmatpush1.msra.mxu0 0.0
    %2762 = vmatprep.subr.mxu0 0.0
    %2763 = vmatpush1.msra.mxu0 0.0
    %2764 = vmatprep.subr.mxu0 0.0
    %2765 = vmatpush1.msra.mxu0 0.0
    %2766 = vmatprep.subr.mxu0 0.0
    %2767 = vmatpush1.msra.mxu0 0.0
    %2768 = vmatprep.subr.mxu0 0.0
    %2769 = vmatpush1.msra.mxu0 0.0
    %2770 = vmatprep.subr.mxu0 0.0
    %2771 = vmatpush1.msra.mxu0 0.0
    %2772 = vmatprep.subr.mxu0 0.0
    %2773 = vmatpush1.msra.mxu0 0.0
    %2774 = vmatprep.subr.mxu0 0.0
    %2775 = vmatpush1.msra.mxu0 0.0
    %2776 = vmatprep.subr.mxu0 0.0
    %2777 = vmatpush1.msra.mxu0 0.0
    %2778 = vmatprep.subr.mxu0 0.0
    %2779 = vmatpush1.msra.mxu0 0.0
    %2780 = vmatprep.subr.mxu0 0.0
    %2781 = vmatpush1.msra.mxu0 0.0
    %2782 = vmatprep.subr.mxu0 0.0
    %2783 = vmatpush1.msra.mxu0 0.0
    %2784 = vmatprep.subr.mxu0 0.0
    %2785 = vmatpush1.msra.mxu0 0.0
    %2786 = vmatprep.subr.mxu0 0.0
    %2787 = vmatpush1.msra.mxu0 0.0
    %2788 = vmatprep.subr.mxu0 0.0
    %2789 = vmatpush1.msra.mxu0 0.0
    %2790 = vmatprep.subr.mxu0 0.0
    %2791 = vmatpush1.msra.mxu0 0.0
    %2792 = vmatprep.subr.mxu0 0.0
    %2793 = vmatpush1.msra.mxu0 0.0
    %2794 = vmatprep.subr.mxu0 0.0
    %2795 = vmatpush1.msra.mxu0 0.0
    %2796 = vmatprep.subr.mxu0 0.0
    %2797 = vmatpush1.msra.mxu0 0.0
    %2798 = vmatprep.subr.mxu0 0.0
    %2799 = vmatpush1.msra.mxu0 0.0
    %2800 = vmatprep.subr.mxu0 0.0
    %2801 = vmatpush1.msra.mxu0 0.0
    %2802 = vmatprep.subr.mxu0 0.0
    %2803 = vmatpush1.msra.mxu0 0.0
    %2804 = vmatprep.subr.mxu0 0.0
    %2805 = vmatpush1.msra.mxu0 0.0
    %2806 = vmatprep.subr.mxu0 0.0
    %2807 = vmatpush1.msra.mxu0 0.0
    %2808 = vmatprep.mubr.f32.mxu0 0.0
    %2809 = vmatmul.mubr.f32.gmra.mrb[0].mxu0 %v2742
    %v2810 = vpop.f32.mrb[0].mxu0
    %v2811 = vadd.f32 0.0, %v2810
    %v2812 = vpop.f32.mrb[0].mxu0
    %v2813 = vadd.f32 0.0, %v2812
    %2814 = vdwg.mxu0
    %v2815 = vmul.f32 %v2811, %v2811
    %v2816 = vmul.f32 %v2813, %v2813
    %v2817 = vld [vmem:[%s6] sm:$0xff]
    %v2818 = vld [vmem:[%s6 + $0x8] sm:$0xff]
    %v2819 = vld [vmem:[%s6 + $0x10] sm:$0xff]
    %v2820 = vld [vmem:[%s6 + $0x18] sm:$0xff]
    %v2821 = vld [vmem:[%s6 + $0x20] sm:$0xff]
    %v2822 = vld [vmem:[%s6 + $0x28] sm:$0xff]
    %v2823 = vld [vmem:[%s6 + $0x30] sm:$0xff]
    %v2824 = vld [vmem:[%s6 + $0x38] sm:$0xff]
    %v2825 = vld [vmem:[%s6 + $0x40] sm:$0xff]
    %v2826 = vld [vmem:[%s6 + $0x48] sm:$0xff]
    %v2827 = vld [vmem:[%s6 + $0x50] sm:$0xff]
    %v2828 = vld [vmem:[%s6 + $0x58] sm:$0xff]
    %v2829 = vld [vmem:[%s6 + $0x60] sm:$0xff]
    %v2830 = vld [vmem:[%s6 + $0x68] sm:$0xff]
    %v2831 = vld [vmem:[%s6 + $0x70] sm:$0xff]
    %v2832 = vld [vmem:[%s6 + $0x78] sm:$0xff]
    %v2833 = vld [vmem:[%s6 + $0x80] sm:$0xff]
    %v2834 = vld [vmem:[%s6 + $0x88] sm:$0xff]
    %v2835 = vld [vmem:[%s6 + $0x90] sm:$0xff]
    %v2836 = vld [vmem:[%s6 + $0x98] sm:$0xff]
    %v2837 = vld [vmem:[%s6 + $0xa0] sm:$0xff]
    %v2838 = vld [vmem:[%s6 + $0xa8] sm:$0xff]
    %v2839 = vld [vmem:[%s6 + $0xb0] sm:$0xff]
    %v2840 = vld [vmem:[%s6 + $0xb8] sm:$0xff]
    %v2841 = vld [vmem:[%s6 + $0xc0] sm:$0xff]
    %v2842 = vld [vmem:[%s6 + $0xc8] sm:$0xff]
    %v2843 = vld [vmem:[%s6 + $0xd0] sm:$0xff]
    %v2844 = vld [vmem:[%s6 + $0xd8] sm:$0xff]
    %v2845 = vld [vmem:[%s6 + $0xe0] sm:$0xff]
    %v2846 = vld [vmem:[%s6 + $0xe8] sm:$0xff]
    %v2847 = vld [vmem:[%s6 + $0xf0] sm:$0xff]
    %v2848 = vld [vmem:[%s6 + $0xf8] sm:$0xff]
    %v2849 = vld [vmem:[%s6 + $0x100] sm:$0xff]
    %v2850 = vld [vmem:[%s6 + $0x108] sm:$0xff]
    %v2851 = vld [vmem:[%s6 + $0x110] sm:$0xff]
    %v2852 = vld [vmem:[%s6 + $0x118] sm:$0xff]
    %v2853 = vld [vmem:[%s6 + $0x120] sm:$0xff]
    %v2854 = vld [vmem:[%s6 + $0x128] sm:$0xff]
    %v2855 = vld [vmem:[%s6 + $0x130] sm:$0xff]
    %v2856 = vld [vmem:[%s6 + $0x138] sm:$0xff]
    %v2858 = vsel %vm2740, %v2816, 0
    %2860 = vmatprep.subr.mxu0 %v2818
    %2861 = vmatpush1.msra.mxu0 %v2817
    %2862 = vmatprep.subr.mxu0 %v2820
    %2863 = vmatpush1.msra.mxu0 %v2819
    %2864 = vmatprep.subr.mxu0 %v2822
    %2865 = vmatpush1.msra.mxu0 %v2821
    %2866 = vmatprep.subr.mxu0 %v2824
    %2867 = vmatpush1.msra.mxu0 %v2823
    %2868 = vmatprep.subr.mxu0 %v2826
    %2869 = vmatpush1.msra.mxu0 %v2825
    %2870 = vmatprep.subr.mxu0 %v2828
    %2871 = vmatpush1.msra.mxu0 %v2827
    %2872 = vmatprep.subr.mxu0 %v2830
    %2873 = vmatpush1.msra.mxu0 %v2829
    %2874 = vmatprep.subr.mxu0 %v2832
    %2875 = vmatpush1.msra.mxu0 %v2831
    %2876 = vmatprep.subr.mxu0 %v2834
    %2877 = vmatpush1.msra.mxu0 %v2833
    %2878 = vmatprep.subr.mxu0 %v2836
    %2879 = vmatpush1.msra.mxu0 %v2835
    %2880 = vmatprep.subr.mxu0 %v2838
    %2881 = vmatpush1.msra.mxu0 %v2837
    %2882 = vmatprep.subr.mxu0 %v2840
    %2883 = vmatpush1.msra.mxu0 %v2839
    %2884 = vmatprep.subr.mxu0 %v2842
    %2885 = vmatpush1.msra.mxu0 %v2841
    %2886 = vmatprep.subr.mxu0 %v2844
    %2887 = vmatpush1.msra.mxu0 %v2843
    %2888 = vmatprep.subr.mxu0 %v2846
    %2889 = vmatpush1.msra.mxu0 %v2845
    %2890 = vmatprep.subr.mxu0 %v2848
    %2891 = vmatpush1.msra.mxu0 %v2847
    %2892 = vmatprep.subr.mxu0 %v2850
    %2893 = vmatpush1.msra.mxu0 %v2849
    %2894 = vmatprep.subr.mxu0 %v2852
    %2895 = vmatpush1.msra.mxu0 %v2851
    %2896 = vmatprep.subr.mxu0 %v2854
    %2897 = vmatpush1.msra.mxu0 %v2853
    %2898 = vmatprep.subr.mxu0 %v2856
    %2899 = vmatpush1.msra.mxu0 %v2855
    %2900 = vmatprep.subr.mxu0 0.0
    %2901 = vmatpush1.msra.mxu0 0.0
    %2902 = vmatprep.subr.mxu0 0.0
    %2903 = vmatpush1.msra.mxu0 0.0
    %2904 = vmatprep.subr.mxu0 0.0
    %2905 = vmatpush1.msra.mxu0 0.0
    %2906 = vmatprep.subr.mxu0 0.0
    %2907 = vmatpush1.msra.mxu0 0.0
    %2908 = vmatprep.subr.mxu0 0.0
    %2909 = vmatpush1.msra.mxu0 0.0
    %2910 = vmatprep.subr.mxu0 0.0
    %2911 = vmatpush1.msra.mxu0 0.0
    %2912 = vmatprep.subr.mxu0 0.0
    %2913 = vmatpush1.msra.mxu0 0.0
    %2914 = vmatprep.subr.mxu0 0.0
    %2915 = vmatpush1.msra.mxu0 0.0
    %2916 = vmatprep.subr.mxu0 0.0
    %2917 = vmatpush1.msra.mxu0 0.0
    %2918 = vmatprep.subr.mxu0 0.0
    %2919 = vmatpush1.msra.mxu0 0.0
    %2920 = vmatprep.subr.mxu0 0.0
    %2921 = vmatpush1.msra.mxu0 0.0
    %2922 = vmatprep.subr.mxu0 0.0
    %2923 = vmatpush1.msra.mxu0 0.0
    %2924 = vmatprep.mubr.f32.mxu0 %v2858
    %2925 = vmatmul.mubr.f32.gmra.mrb[0].mxu0 %v2815
    %v2926 = vpop.f32.mrb[0].mxu0
    %v2927 = vadd.f32 0.0, %v2926
    %v2928 = vpop.f32.mrb[0].mxu0
    %v2929 = vadd.f32 0.0, %v2928
    %2930 = vdwg.mxu0
    %v2931 = vrsqrt.pop %v2927
    %v2932 = vmul.f32 %v2927, %v2931
    %vm2933 = vcmp.eq.f32.partialorder %v2927, inf
    %v2934 = vsel %vm2933, %v2927, %v2932
    %vm2935 = vcmp.eq.f32.partialorder %v2927, 0.0
    %v2936 = vand.u32 %v2927, 2147483648
    %v2937 = vsel %vm2935, %v2936, %v2934
    %v2938 = vrsqrt.pop %v2929
    %v2939 = vmul.f32 %v2929, %v2938
    %vm2940 = vcmp.eq.f32.partialorder %v2929, inf
    %v2941 = vsel %vm2940, %v2929, %v2939
    %vm2942 = vcmp.eq.f32.partialorder %v2929, 0.0
    %v2943 = vand.u32 %v2929, 2147483648
    %v2944 = vsel %vm2942, %v2943, %v2941
    %v2945 = vmul.f32 %v2811, %v2937
    %v2946 = vmul.f32 %v2813, %v2944
    %v2947 = vadd.f32 %v2927, 1.0
    %v2948 = vadd.f32 %v2929, 1.0
    %v2949 = vrcp.pop %v2947
    %v2950 = vrcp.pop %v2948
    %v2951 = vmul.f32 %v2945, %v2949
    %v2952 = vmul.f32 %v2946, %v2950
    %2953 = vst [vmem:[#allocation5] sm:$0xff] %v2951
    %2954 = vst.msk [vmem:[#allocation5 + $0x8] sm:$0xff] %vm2740, %v2952
    // Predicated region
    $region34: #{tpu_custom_call.1} parent=1 // pred_check
      _
    $region35: #{tpu_custom_call.1} parent=1 // pred_check_branch
      %2956 = sbr.rel (0) target = $region37
    $region36: #{tpu_custom_call.1} parent=1 // pred_region
      %s2958 = ssub.s32 256, 256
      %2959 = vsyncadd [#allocation4], %s2958
      %s2961 = sshll.u32 [#allocation5], 4
      %s2962 = int_to_ptr.vmem [resolvable:$true] %s2961
      %2964 = dma.vmem_to_hbm [thread:$0]  %s2962, 256, %s7, [#allocation4]
    $region37: #{tpu_custom_call.1} parent=1 // pred_fallthru
      _
    // Predicated region
    $region38: #{tpu_custom_call.1} parent=1 // pred_check
      _
    $region39: #{tpu_custom_call.1} parent=1 // pred_check_branch
      %2966 = sbr.rel (0) target = $region41
    $region40: #{tpu_custom_call.1} parent=1 // pred_region
      %2967 = dma.done [#allocation4], 256
    $region41: #{tpu_custom_call.1} parent=1 // pred_fallthru
      _
    %2968 = vsyncpa [#allocation3], 1
    %2969 = vsyncpa [#allocation4], 1

</llo_original>
